<compile_context>
chip_gen: v7x
topology: tpu7x:2x2x1
jax: 0.10.0
libtpu: 0.0.40
codegen_flags: <defaults>
</compile_context>

<pallas_src>
import functools
import math

import jax
import jax.numpy as jnp
from jax import lax
from jax.experimental import pallas as pl
from jax.experimental.pallas import tpu as pltpu


_VMEM_LIMIT_BYTES = 32 * 1024 * 1024


# ----------------------------------------------------------------------------
# helpers
# ----------------------------------------------------------------------------

def _layernorm_val(y, gamma, beta, eps):
    """LayerNorm over the last dim of a value (f32 math), gamma/beta (1, E)."""
    mean = jnp.mean(y, axis=-1, keepdims=True)
    c = y - mean
    var = jnp.mean(c * c, axis=-1, keepdims=True)
    return c * lax.rsqrt(var + eps) * gamma + beta


def sinusoidal_pe(max_len, emb_size):
    pos = jnp.arange(max_len, dtype=jnp.float32)[:, None]
    idx = jnp.arange(0, emb_size, 2, dtype=jnp.float32)
    div = jnp.exp(-math.log(10000.0) * idx / emb_size)
    pe = jnp.zeros((max_len, emb_size), dtype=jnp.float32)
    pe = pe.at[:, 0::2].set(jnp.sin(pos * div))
    pe = pe.at[:, 1::2].set(jnp.cos(pos * div))
    return pe


# ----------------------------------------------------------------------------
# fused encoder kernel (one grid step = one (batch element, layer) pair)
# ----------------------------------------------------------------------------

def _encoder_fused_kernel(x_ref, mask_ref,
                          wqkv_ref, bqkv_ref, wo_ref, bo_ref, ln1g_ref, ln1b_ref,
                          w1_ref, b1_ref, w2_ref, b2_ref, ln2g_ref, ln2b_ref,
                          lnfg_ref, lnfb_ref,
                          o_ref,
                          x_scr,
                          *, num_heads, scale, eps):
    l = pl.program_id(1)                       # layer index (innermost axis)
    last_l = pl.num_programs(1) - 1

    # Load the embedded input into the resident VMEM scratch once per batch elem.
    @pl.when(l == 0)
    def _load_x():
        x_scr[...] = x_ref[...]

    x = x_scr[...]                             # (S, E) f32
    S, E = x.shape
    Dk = E // num_heads
    mask = mask_ref[...]                       # (1, S) additive bias, 0 / -1e9
    wdt = wqkv_ref.dtype                       # bf16 matmul operand dtype

    # ---- attention sublayer: y1 = LN(x + Wo @ MHA(x) + bo) ------------------
    qkv = jnp.dot(x.astype(wdt), wqkv_ref[...],
                  preferred_element_type=jnp.float32) + bqkv_ref[...]   # (S, 3E)

    wo = wo_ref[...]                           # (E, E) bf16, VMEM-resident
    y = x + bo_ref[...]                        # residual + output-proj bias

    # TODO(synk): for large S switch to online-softmax KV tiling (flash pattern);
    # the full (S,S) per-head scores are fine here (S is tiny).
    for hd in range(num_heads):                # static unroll
        qh = qkv[:, hd * Dk:(hd + 1) * Dk]
        kh = qkv[:, E + hd * Dk:E + (hd + 1) * Dk]
        vh = qkv[:, 2 * E + hd * Dk:2 * E + (hd + 1) * Dk]
        # q @ k^T with no materialized transpose.
        s = lax.dot_general(qh.astype(wdt), kh.astype(wdt),
                            (((1,), (1,)), ((), ())),
                            preferred_element_type=jnp.float32) * scale
        s = s + mask                           # broadcast over query rows
        s = s - jnp.max(s, axis=-1, keepdims=True)
        p = jnp.exp(s)
        p = p * pl.reciprocal(jnp.sum(p, axis=-1, keepdims=True), approx=True)
        ctx = jnp.dot(p.astype(wdt), vh.astype(wdt),
                      preferred_element_type=jnp.float32)              # (S, Dk)
        # Fold the head concat into the output projection: accumulate with the
        # matching row-slice of Wo (no (S,E) ctx intermediate, no lane shuffles).
        y = y + jnp.dot(ctx.astype(wdt), wo[hd * Dk:(hd + 1) * Dk, :],
                        preferred_element_type=jnp.float32)
    y1 = _layernorm_val(y, ln1g_ref[...], ln1b_ref[...], eps)

    # ---- FFN sublayer: y2 = LN(y1 + W2 @ relu(W1 @ y1 + b1) + b2) -----------
    hid = jnp.dot(y1.astype(w1_ref.dtype), w1_ref[...],
                  preferred_element_type=jnp.float32) + b1_ref[...]
    hid = jnp.maximum(hid, 0.0)
    f = jnp.dot(hid.astype(w2_ref.dtype), w2_ref[...],
                preferred_element_type=jnp.float32) + b2_ref[...]
    y2 = _layernorm_val(f + y1, ln2g_ref[...], ln2b_ref[...], eps)

    # Keep the activation resident in VMEM for the next layer step.
    x_scr[...] = y2

    # Final encoder LayerNorm fused into the last layer step.
    @pl.when(l == last_l)
    def _final():
        o_ref[...] = _layernorm_val(y2, lnfg_ref[...], lnfb_ref[...],
                                    eps).astype(o_ref.dtype)


# ----------------------------------------------------------------------------
# pallas_call wrapper
# ----------------------------------------------------------------------------

def encoder_stack(x, add_mask, p, *, num_heads, eps=1e-5):
    """x: (B, S, E) f32 embedded input; add_mask: (B, 1, S) additive bias."""
    B, S, E = x.shape
    L = p["wqkv"].shape[0]
    Dff = p["w1"].shape[-1]
    scale = 1.0 / math.sqrt(E // num_heads)

    def wspec(*dims):
        # Per-layer stacked weight: block over the layer axis (varies with l,
        # so the pipeline prefetches next layer's weights), constant over batch.
        zeros = (0,) * len(dims)
        return pl.BlockSpec((None,) + dims, lambda b, l: (l,) + zeros)

    in_specs = [
        pl.BlockSpec((None, S, E), lambda b, l: (b, 0, 0)),   # x (per batch elem)
        pl.BlockSpec((None, 1, S), lambda b, l: (b, 0, 0)),   # additive mask
        wspec(E, 3 * E),      # wqkv (bf16)
        wspec(1, 3 * E),      # bqkv
        wspec(E, E),          # wo   (bf16)
        wspec(1, E),          # bo
        wspec(1, E),          # ln1_g
        wspec(1, E),          # ln1_b
        wspec(E, Dff),        # w1   (bf16)
        wspec(1, Dff),        # b1
        wspec(Dff, E),        # w2   (bf16)
        wspec(1, E),          # b2
        wspec(1, E),          # ln2_g
        wspec(1, E),          # ln2_b
        pl.BlockSpec((1, E), lambda b, l: (0, 0)),            # final LN gamma
        pl.BlockSpec((1, E), lambda b, l: (0, 0)),            # final LN beta
    ]

    # Advisory cost hint for XLA scheduling around the fused kernel.
    flops = L * B * S * (8 * E * E + 4 * S * E + 4 * E * Dff)
    transcendentals = L * B * num_heads * S * S
    bytes_accessed = (2 * B * S * E * 4 + B * S * 4 + 2 * E * 4
                      + B * L * ((3 * E * E + E * E + 2 * E * Dff) * 2
                                 + (4 * E + 5 * E + Dff) * 4))

    # TODO(synk): at production sizes (E>=1024) on v7x (64 MiB VMEM), add
    # pipeline_mode=pl.Buffered(1) on batch-constant specs and re-derive tiles;
    # also consider input_output_aliases to reuse the embedded-x HBM buffer.
    # TODO(synk): E=32 leaves 3/4 of the 128 lanes idle on the LN/store path;
    # irrelevant here, pack 4 tokens per row if the production E stays < 128.
    return pl.pallas_call(
        functools.partial(_encoder_fused_kernel, num_heads=num_heads,
                          scale=scale, eps=eps),
        grid=(B, L),
        in_specs=in_specs,
        out_specs=pl.BlockSpec((None, S, E), lambda b, l: (b, 0, 0)),
        out_shape=jax.ShapeDtypeStruct((B, S, E), x.dtype),
        scratch_shapes=[pltpu.VMEM((S, E), jnp.float32)],     # resident activation
        compiler_params=pltpu.CompilerParams(
            dimension_semantics=("parallel", "arbitrary"),
            vmem_limit_bytes=_VMEM_LIMIT_BYTES),
        cost_estimate=pl.CostEstimate(flops=flops,
                                      transcendentals=transcendentals,
                                      bytes_accessed=bytes_accessed),
    )(x, add_mask, p["wqkv"], p["bqkv"], p["wo"], p["bo"],
      p["ln1_g"], p["ln1_b"], p["w1"], p["b1"], p["w2"], p["b2"],
      p["ln2_g"], p["ln2_b"], p["lnf_g"], p["lnf_b"])


# ----------------------------------------------------------------------------
# Parameters & forward
# ----------------------------------------------------------------------------

def init_params(key, vocab_size, emb_size, d_ff, num_layers, max_len):
    E, Dff, L = emb_size, d_ff, num_layers
    keys = jax.random.split(key, 1 + L)
    std = 0.02
    wqkv, wo, w1, w2 = [], [], [], []
    for l in range(L):
        lk = jax.random.split(keys[1 + l], 6)
        wq = std * jax.random.normal(lk[0], (E, E), jnp.float32)
        wk = std * jax.random.normal(lk[1], (E, E), jnp.float32)
        wv = std * jax.random.normal(lk[2], (E, E), jnp.float32)
        wqkv.append(jnp.concatenate([wq, wk, wv], axis=1))     # fused QKV (E, 3E)
        wo.append(std * jax.random.normal(lk[3], (E, E), jnp.float32))
        w1.append(std * jax.random.normal(lk[4], (E, Dff), jnp.float32))
        w2.append(std * jax.random.normal(lk[5], (Dff, E), jnp.float32))
    return {
        "emb": std * jax.random.normal(keys[0], (vocab_size, E), jnp.float32),
        "pe": sinusoidal_pe(max_len, E),
        # matmul weights stacked on a leading layer axis, stored bf16
        "wqkv": jnp.stack(wqkv).astype(jnp.bfloat16),          # (L, E, 3E)
        "wo": jnp.stack(wo).astype(jnp.bfloat16),              # (L, E, E)
        "w1": jnp.stack(w1).astype(jnp.bfloat16),              # (L, E, Dff)
        "w2": jnp.stack(w2).astype(jnp.bfloat16),              # (L, Dff, E)
        # biases / LayerNorm params stay f32 (f32 epilogue math)
        "bqkv": jnp.zeros((L, 1, 3 * E), jnp.float32),
        "bo": jnp.zeros((L, 1, E), jnp.float32),
        "ln1_g": jnp.ones((L, 1, E), jnp.float32),
        "ln1_b": jnp.zeros((L, 1, E), jnp.float32),
        "b1": jnp.zeros((L, 1, Dff), jnp.float32),
        "b2": jnp.zeros((L, 1, E), jnp.float32),
        "ln2_g": jnp.ones((L, 1, E), jnp.float32),
        "ln2_b": jnp.zeros((L, 1, E), jnp.float32),
        "lnf_g": jnp.ones((1, E), jnp.float32),
        "lnf_b": jnp.zeros((1, E), jnp.float32),
    }


def encoder_forward(params, x_ids, src_mask, *, emb_size, num_heads):
    """x_ids: (B, S) int32 token ids; src_mask: (B, 1, S) float (1=keep, 0=mask)."""
    B, S = x_ids.shape
    E = emb_size

    # TODO(synk): `Encoding` / `Encoding_layer` sources are not provided; standard
    # transformer semantics assumed (sqrt(E)-scaled embedding + sinusoidal PE,
    # post-LN sublayers, eps=1e-5); dropout is identity at inference.
    # TODO(synk): token-embedding gather stays in XLA (jnp.take); no clean
    # rectangular-BlockSpec Pallas equivalent at this scale.
    emb = jnp.take(params["emb"], x_ids, axis=0)                       # (B, S, E)
    x = (emb * math.sqrt(E) + params["pe"][None, :S, :]).astype(jnp.float32)

    # Additive attention bias (0 = keep, -1e9 = masked), computed once.
    add_mask = jnp.where(src_mask > 0.5, 0.0, -1e9).astype(jnp.float32)  # (B,1,S)

    # One fused pallas_call: all layers + final LayerNorm.
    return encoder_stack(x, add_mask, params, num_heads=num_heads)


# ----------------------------------------------------------------------------
# main
# ----------------------------------------------------------------------------

if __name__ == "__main__":
    vocab_size, emb_size, d_ff, max_len, h, Num = 50, 32, 64, 16, 4, 2
    B, S = 2, 8

    key = jax.random.PRNGKey(0)
    k_param, k_ids = jax.random.split(key)

    params = init_params(k_param, vocab_size, emb_size, d_ff, Num, max_len)
    x_ids = jax.random.randint(k_ids, (B, S), 0, vocab_size, dtype=jnp.int32)
    src_mask = jnp.ones((B, 1, S), dtype=jnp.float32)   # all positions valid

    fwd = jax.jit(functools.partial(encoder_forward,
                                    emb_size=emb_size, num_heads=h))
    out = jax.block_until_ready(fwd(params, x_ids, src_mask))

    assert out.shape == (B, S, emb_size)
    assert jnp.all(jnp.isfinite(out))
    print("KERNEL_OK")
</pallas_src>

<mosaic_0001>
module attributes {stable_mosaic.version = 11 : i64} {
  func.func @_encoder_fused_kernel(%arg0: i32, %arg1: i32, %arg2: memref<1x8x32xf32, #tpu.memory_space<vmem>>, %arg3: memref<1x1x8xf32, #tpu.memory_space<vmem>>, %arg4: memref<1x32x96xbf16, #tpu.memory_space<vmem>>, %arg5: memref<1x1x96xf32, #tpu.memory_space<vmem>>, %arg6: memref<1x32x32xbf16, #tpu.memory_space<vmem>>, %arg7: memref<1x1x32xf32, #tpu.memory_space<vmem>>, %arg8: memref<1x1x32xf32, #tpu.memory_space<vmem>>, %arg9: memref<1x1x32xf32, #tpu.memory_space<vmem>>, %arg10: memref<1x32x64xbf16, #tpu.memory_space<vmem>>, %arg11: memref<1x1x64xf32, #tpu.memory_space<vmem>>, %arg12: memref<1x64x32xbf16, #tpu.memory_space<vmem>>, %arg13: memref<1x1x32xf32, #tpu.memory_space<vmem>>, %arg14: memref<1x1x32xf32, #tpu.memory_space<vmem>>, %arg15: memref<1x1x32xf32, #tpu.memory_space<vmem>>, %arg16: memref<1x32xf32, #tpu.memory_space<vmem>>, %arg17: memref<1x32xf32, #tpu.memory_space<vmem>>, %arg18: memref<1x8x32xf32, #tpu.memory_space<vmem>>, %arg19: memref<8x32xf32, #tpu.memory_space<vmem>>) attributes {dimension_semantics = [#tpu.dimension_semantics<parallel>, #tpu.dimension_semantics<arbitrary>], iteration_bounds = array<i64: 2, 2>, scalar_prefetch = 0 : i64, scratch_operands = 1 : i64, tpu.core_type = #tpu.core_type<tc>, window_params = [{transform_indices = @transform_0, window_bounds = array<i64: 1, 8, 32>}, {transform_indices = @transform_1, window_bounds = array<i64: 1, 1, 8>}, {transform_indices = @transform_2, window_bounds = array<i64: 1, 32, 96>}, {transform_indices = @transform_3, window_bounds = array<i64: 1, 1, 96>}, {transform_indices = @transform_4, window_bounds = array<i64: 1, 32, 32>}, {transform_indices = @transform_5, window_bounds = array<i64: 1, 1, 32>}, {transform_indices = @transform_6, window_bounds = array<i64: 1, 1, 32>}, {transform_indices = @transform_7, window_bounds = array<i64: 1, 1, 32>}, {transform_indices = @transform_8, window_bounds = array<i64: 1, 32, 64>}, {transform_indices = @transform_9, window_bounds = array<i64: 1, 1, 64>}, {transform_indices = @transform_10, window_bounds = array<i64: 1, 64, 32>}, {transform_indices = @transform_11, window_bounds = array<i64: 1, 1, 32>}, {transform_indices = @transform_12, window_bounds = array<i64: 1, 1, 32>}, {transform_indices = @transform_13, window_bounds = array<i64: 1, 1, 32>}, {pipeline_mode = #tpu.pipeline_mode<synchronous>, transform_indices = @transform_14, window_bounds = array<i64: 1, 32>}, {pipeline_mode = #tpu.pipeline_mode<synchronous>, transform_indices = @transform_15, window_bounds = array<i64: 1, 32>}, {transform_indices = @transform_16, window_bounds = array<i64: 1, 8, 32>}]} {
    %c0_i32 = arith.constant 0 : i32
    %0 = arith.cmpi eq, %arg1, %c0_i32 : i32
    %1 = arith.extui %0 : i1 to i32
    %c0_i32_0 = arith.constant 0 : i32
    %2 = arith.cmpi ne, %1, %c0_i32_0 : i32
    scf.if %2 {
      %c0_81 = arith.constant 0 : index
      %c0_82 = arith.constant 0 : index
      %c0_83 = arith.constant 0 : index
      %199 = vector.load %arg2[%c0_81, %c0_82, %c0_83] : memref<1x8x32xf32, #tpu.memory_space<vmem>>, vector<1x8x32xf32>
      %200 = vector.shape_cast %199 : vector<1x8x32xf32> to vector<8x32xf32>
      %c0_84 = arith.constant 0 : index
      %c0_85 = arith.constant 0 : index
      %201 = vector.load %arg19[%c0_84, %c0_85] : memref<8x32xf32, #tpu.memory_space<vmem>>, vector<8x32xf32>
      tpu.vector_store %arg19[%c0_84, %c0_85], %200 {strides = array<i32>} : memref<8x32xf32, #tpu.memory_space<vmem>>, vector<8x32xf32>,
    } else {
    }
    %c0 = arith.constant 0 : index
    %c0_1 = arith.constant 0 : index
    %3 = vector.load %arg19[%c0, %c0_1] : memref<8x32xf32, #tpu.memory_space<vmem>>, vector<8x32xf32>
    %c0_2 = arith.constant 0 : index
    %c0_3 = arith.constant 0 : index
    %c0_4 = arith.constant 0 : index
    %4 = vector.load %arg3[%c0_2, %c0_3, %c0_4] : memref<1x1x8xf32, #tpu.memory_space<vmem>>, vector<1x1x8xf32>
    %5 = vector.shape_cast %4 : vector<1x1x8xf32> to vector<1x8xf32>
    %6 = arith.truncf %3 : vector<8x32xf32> to vector<8x32xbf16>
    %c0_5 = arith.constant 0 : index
    %c0_6 = arith.constant 0 : index
    %c0_7 = arith.constant 0 : index
    %7 = vector.load %arg4[%c0_5, %c0_6, %c0_7] : memref<1x32x96xbf16, #tpu.memory_space<vmem>>, vector<1x32x96xbf16>
    %8 = vector.shape_cast %7 : vector<1x32x96xbf16> to vector<32x96xbf16>
    %cst = arith.constant dense<0.000000e+00> : vector<8x96xf32>
    %9 = tpu.matmul %6, %8, %cst {dimension_numbers = #tpu.dot_dimension_numbers<[1], [0], [0], [1], [0, 0, 1, 1], [], []>} : vector<8x32xbf16>, vector<32x96xbf16>, vector<8x96xf32> -> vector<8x96xf32>
    %c0_8 = arith.constant 0 : index
    %c0_9 = arith.constant 0 : index
    %c0_10 = arith.constant 0 : index
    %10 = vector.load %arg5[%c0_8, %c0_9, %c0_10] : memref<1x1x96xf32, #tpu.memory_space<vmem>>, vector<1x1x96xf32>
    %11 = vector.shape_cast %10 : vector<1x1x96xf32> to vector<1x96xf32>
    %12 = vector.broadcast %11 : vector<1x96xf32> to vector<8x96xf32>
    %13 = arith.addf %9, %12 : vector<8x96xf32>
    %c0_11 = arith.constant 0 : index
    %c0_12 = arith.constant 0 : index
    %c0_13 = arith.constant 0 : index
    %14 = vector.load %arg6[%c0_11, %c0_12, %c0_13] : memref<1x32x32xbf16, #tpu.memory_space<vmem>>, vector<1x32x32xbf16>
    %15 = vector.shape_cast %14 : vector<1x32x32xbf16> to vector<32x32xbf16>
    %c0_14 = arith.constant 0 : index
    %c0_15 = arith.constant 0 : index
    %c0_16 = arith.constant 0 : index
    %16 = vector.load %arg7[%c0_14, %c0_15, %c0_16] : memref<1x1x32xf32, #tpu.memory_space<vmem>>, vector<1x1x32xf32>
    %17 = vector.shape_cast %16 : vector<1x1x32xf32> to vector<1x32xf32>
    %18 = vector.broadcast %17 : vector<1x32xf32> to vector<8x32xf32>
    %19 = arith.addf %3, %18 : vector<8x32xf32>
    %20 = vector.extract_strided_slice %13 {offsets = [0, 0], sizes = [8, 8], strides = [1, 1]} : vector<8x96xf32> to vector<8x8xf32>
    %21 = vector.extract_strided_slice %13 {offsets = [0, 32], sizes = [8, 8], strides = [1, 1]} : vector<8x96xf32> to vector<8x8xf32>
    %22 = vector.extract_strided_slice %13 {offsets = [0, 64], sizes = [8, 8], strides = [1, 1]} : vector<8x96xf32> to vector<8x8xf32>
    %23 = arith.truncf %20 : vector<8x8xf32> to vector<8x8xbf16>
    %24 = arith.truncf %21 : vector<8x8xf32> to vector<8x8xbf16>
    %cst_17 = arith.constant dense<0.000000e+00> : vector<8x8xf32>
    %25 = tpu.matmul %23, %24, %cst_17 {dimension_numbers = #tpu.dot_dimension_numbers<[1], [1], [0], [0], [0, 0, 1, 0], [], []>} : vector<8x8xbf16>, vector<8x8xbf16>, vector<8x8xf32> -> vector<8x8xf32>
    %cst_18 = arith.constant 0.353553385 : f32
    %26 = vector.broadcast %cst_18 : f32 to vector<8x8xf32>
    %27 = arith.mulf %25, %26 : vector<8x8xf32>
    %28 = vector.broadcast %5 : vector<1x8xf32> to vector<8x8xf32>
    %29 = arith.addf %27, %28 : vector<8x8xf32>
    %cst_19 = arith.constant dense<0xFF800000> : vector<8xf32>
    %30 = vector.multi_reduction <maximumf>, %29, %cst_19 [1] : vector<8x8xf32> to vector<8xf32>
    %31 = vector.shape_cast %30 : vector<8xf32> to vector<8x1xf32>
    %32 = vector.broadcast %31 : vector<8x1xf32> to vector<8x8xf32>
    %33 = arith.subf %29, %32 : vector<8x8xf32>
    %34 = math.exp %33 : vector<8x8xf32>
    %cst_20 = arith.constant dense<0.000000e+00> : vector<8xf32>
    %35 = vector.multi_reduction <add>, %34, %cst_20 [1] : vector<8x8xf32> to vector<8xf32>
    %36 = vector.shape_cast %35 : vector<8xf32> to vector<8x1xf32>
    %37 = tpu.reciprocal %36 {approx = true} : vector<8x1xf32> -> vector<8x1xf32>
    %38 = vector.broadcast %37 : vector<8x1xf32> to vector<8x8xf32>
    %39 = arith.mulf %34, %38 : vector<8x8xf32>
    %40 = arith.truncf %39 : vector<8x8xf32> to vector<8x8xbf16>
    %41 = arith.truncf %22 : vector<8x8xf32> to vector<8x8xbf16>
    %cst_21 = arith.constant dense<0.000000e+00> : vector<8x8xf32>
    %42 = tpu.matmul %40, %41, %cst_21 {dimension_numbers = #tpu.dot_dimension_numbers<[1], [0], [0], [1], [0, 0, 1, 1], [], []>} : vector<8x8xbf16>, vector<8x8xbf16>, vector<8x8xf32> -> vector<8x8xf32>
    %43 = arith.truncf %42 : vector<8x8xf32> to vector<8x8xbf16>
    %44 = vector.extract_strided_slice %15 {offsets = [0, 0], sizes = [8, 32], strides = [1, 1]} : vector<32x32xbf16> to vector<8x32xbf16>
    %cst_22 = arith.constant dense<0.000000e+00> : vector<8x32xf32>
    %45 = tpu.matmul %43, %44, %cst_22 {dimension_numbers = #tpu.dot_dimension_numbers<[1], [0], [0], [1], [0, 0, 1, 1], [], []>} : vector<8x8xbf16>, vector<8x32xbf16>, vector<8x32xf32> -> vector<8x32xf32>
    %46 = arith.addf %19, %45 : vector<8x32xf32>
    %47 = vector.extract_strided_slice %13 {offsets = [0, 8], sizes = [8, 8], strides = [1, 1]} : vector<8x96xf32> to vector<8x8xf32>
    %48 = vector.extract_strided_slice %13 {offsets = [0, 40], sizes = [8, 8], strides = [1, 1]} : vector<8x96xf32> to vector<8x8xf32>
    %49 = vector.extract_strided_slice %13 {offsets = [0, 72], sizes = [8, 8], strides = [1, 1]} : vector<8x96xf32> to vector<8x8xf32>
    %50 = arith.truncf %47 : vector<8x8xf32> to vector<8x8xbf16>
    %51 = arith.truncf %48 : vector<8x8xf32> to vector<8x8xbf16>
    %cst_23 = arith.constant dense<0.000000e+00> : vector<8x8xf32>
    %52 = tpu.matmul %50, %51, %cst_23 {dimension_numbers = #tpu.dot_dimension_numbers<[1], [1], [0], [0], [0, 0, 1, 0], [], []>} : vector<8x8xbf16>, vector<8x8xbf16>, vector<8x8xf32> -> vector<8x8xf32>
    %cst_24 = arith.constant 0.353553385 : f32
    %53 = vector.broadcast %cst_24 : f32 to vector<8x8xf32>
    %54 = arith.mulf %52, %53 : vector<8x8xf32>
    %55 = vector.broadcast %5 : vector<1x8xf32> to vector<8x8xf32>
    %56 = arith.addf %54, %55 : vector<8x8xf32>
    %cst_25 = arith.constant dense<0xFF800000> : vector<8xf32>
    %57 = vector.multi_reduction <maximumf>, %56, %cst_25 [1] : vector<8x8xf32> to vector<8xf32>
    %58 = vector.shape_cast %57 : vector<8xf32> to vector<8x1xf32>
    %59 = vector.broadcast %58 : vector<8x1xf32> to vector<8x8xf32>
    %60 = arith.subf %56, %59 : vector<8x8xf32>
    %61 = math.exp %60 : vector<8x8xf32>
    %cst_26 = arith.constant dense<0.000000e+00> : vector<8xf32>
    %62 = vector.multi_reduction <add>, %61, %cst_26 [1] : vector<8x8xf32> to vector<8xf32>
    %63 = vector.shape_cast %62 : vector<8xf32> to vector<8x1xf32>
    %64 = tpu.reciprocal %63 {approx = true} : vector<8x1xf32> -> vector<8x1xf32>
    %65 = vector.broadcast %64 : vector<8x1xf32> to vector<8x8xf32>
    %66 = arith.mulf %61, %65 : vector<8x8xf32>
    %67 = arith.truncf %66 : vector<8x8xf32> to vector<8x8xbf16>
    %68 = arith.truncf %49 : vector<8x8xf32> to vector<8x8xbf16>
    %cst_27 = arith.constant dense<0.000000e+00> : vector<8x8xf32>
    %69 = tpu.matmul %67, %68, %cst_27 {dimension_numbers = #tpu.dot_dimension_numbers<[1], [0], [0], [1], [0, 0, 1, 1], [], []>} : vector<8x8xbf16>, vector<8x8xbf16>, vector<8x8xf32> -> vector<8x8xf32>
    %70 = arith.truncf %69 : vector<8x8xf32> to vector<8x8xbf16>
    %71 = vector.extract_strided_slice %15 {offsets = [8, 0], sizes = [8, 32], strides = [1, 1]} : vector<32x32xbf16> to vector<8x32xbf16>
    %cst_28 = arith.constant dense<0.000000e+00> : vector<8x32xf32>
    %72 = tpu.matmul %70, %71, %cst_28 {dimension_numbers = #tpu.dot_dimension_numbers<[1], [0], [0], [1], [0, 0, 1, 1], [], []>} : vector<8x8xbf16>, vector<8x32xbf16>, vector<8x32xf32> -> vector<8x32xf32>
    %73 = arith.addf %46, %72 : vector<8x32xf32>
    %74 = vector.extract_strided_slice %13 {offsets = [0, 16], sizes = [8, 8], strides = [1, 1]} : vector<8x96xf32> to vector<8x8xf32>
    %75 = vector.extract_strided_slice %13 {offsets = [0, 48], sizes = [8, 8], strides = [1, 1]} : vector<8x96xf32> to vector<8x8xf32>
    %76 = vector.extract_strided_slice %13 {offsets = [0, 80], sizes = [8, 8], strides = [1, 1]} : vector<8x96xf32> to vector<8x8xf32>
    %77 = arith.truncf %74 : vector<8x8xf32> to vector<8x8xbf16>
    %78 = arith.truncf %75 : vector<8x8xf32> to vector<8x8xbf16>
    %cst_29 = arith.constant dense<0.000000e+00> : vector<8x8xf32>
    %79 = tpu.matmul %77, %78, %cst_29 {dimension_numbers = #tpu.dot_dimension_numbers<[1], [1], [0], [0], [0, 0, 1, 0], [], []>} : vector<8x8xbf16>, vector<8x8xbf16>, vector<8x8xf32> -> vector<8x8xf32>
    %cst_30 = arith.constant 0.353553385 : f32
    %80 = vector.broadcast %cst_30 : f32 to vector<8x8xf32>
    %81 = arith.mulf %79, %80 : vector<8x8xf32>
    %82 = vector.broadcast %5 : vector<1x8xf32> to vector<8x8xf32>
    %83 = arith.addf %81, %82 : vector<8x8xf32>
    %cst_31 = arith.constant dense<0xFF800000> : vector<8xf32>
    %84 = vector.multi_reduction <maximumf>, %83, %cst_31 [1] : vector<8x8xf32> to vector<8xf32>
    %85 = vector.shape_cast %84 : vector<8xf32> to vector<8x1xf32>
    %86 = vector.broadcast %85 : vector<8x1xf32> to vector<8x8xf32>
    %87 = arith.subf %83, %86 : vector<8x8xf32>
    %88 = math.exp %87 : vector<8x8xf32>
    %cst_32 = arith.constant dense<0.000000e+00> : vector<8xf32>
    %89 = vector.multi_reduction <add>, %88, %cst_32 [1] : vector<8x8xf32> to vector<8xf32>
    %90 = vector.shape_cast %89 : vector<8xf32> to vector<8x1xf32>
    %91 = tpu.reciprocal %90 {approx = true} : vector<8x1xf32> -> vector<8x1xf32>
    %92 = vector.broadcast %91 : vector<8x1xf32> to vector<8x8xf32>
    %93 = arith.mulf %88, %92 : vector<8x8xf32>
    %94 = arith.truncf %93 : vector<8x8xf32> to vector<8x8xbf16>
    %95 = arith.truncf %76 : vector<8x8xf32> to vector<8x8xbf16>
    %cst_33 = arith.constant dense<0.000000e+00> : vector<8x8xf32>
    %96 = tpu.matmul %94, %95, %cst_33 {dimension_numbers = #tpu.dot_dimension_numbers<[1], [0], [0], [1], [0, 0, 1, 1], [], []>} : vector<8x8xbf16>, vector<8x8xbf16>, vector<8x8xf32> -> vector<8x8xf32>
    %97 = arith.truncf %96 : vector<8x8xf32> to vector<8x8xbf16>
    %98 = vector.extract_strided_slice %15 {offsets = [16, 0], sizes = [8, 32], strides = [1, 1]} : vector<32x32xbf16> to vector<8x32xbf16>
    %cst_34 = arith.constant dense<0.000000e+00> : vector<8x32xf32>
    %99 = tpu.matmul %97, %98, %cst_34 {dimension_numbers = #tpu.dot_dimension_numbers<[1], [0], [0], [1], [0, 0, 1, 1], [], []>} : vector<8x8xbf16>, vector<8x32xbf16>, vector<8x32xf32> -> vector<8x32xf32>
    %100 = arith.addf %73, %99 : vector<8x32xf32>
    %101 = vector.extract_strided_slice %13 {offsets = [0, 24], sizes = [8, 8], strides = [1, 1]} : vector<8x96xf32> to vector<8x8xf32>
    %102 = vector.extract_strided_slice %13 {offsets = [0, 56], sizes = [8, 8], strides = [1, 1]} : vector<8x96xf32> to vector<8x8xf32>
    %103 = vector.extract_strided_slice %13 {offsets = [0, 88], sizes = [8, 8], strides = [1, 1]} : vector<8x96xf32> to vector<8x8xf32>
    %104 = arith.truncf %101 : vector<8x8xf32> to vector<8x8xbf16>
    %105 = arith.truncf %102 : vector<8x8xf32> to vector<8x8xbf16>
    %cst_35 = arith.constant dense<0.000000e+00> : vector<8x8xf32>
    %106 = tpu.matmul %104, %105, %cst_35 {dimension_numbers = #tpu.dot_dimension_numbers<[1], [1], [0], [0], [0, 0, 1, 0], [], []>} : vector<8x8xbf16>, vector<8x8xbf16>, vector<8x8xf32> -> vector<8x8xf32>
    %cst_36 = arith.constant 0.353553385 : f32
    %107 = vector.broadcast %cst_36 : f32 to vector<8x8xf32>
    %108 = arith.mulf %106, %107 : vector<8x8xf32>
    %109 = vector.broadcast %5 : vector<1x8xf32> to vector<8x8xf32>
    %110 = arith.addf %108, %109 : vector<8x8xf32>
    %cst_37 = arith.constant dense<0xFF800000> : vector<8xf32>
    %111 = vector.multi_reduction <maximumf>, %110, %cst_37 [1] : vector<8x8xf32> to vector<8xf32>
    %112 = vector.shape_cast %111 : vector<8xf32> to vector<8x1xf32>
    %113 = vector.broadcast %112 : vector<8x1xf32> to vector<8x8xf32>
    %114 = arith.subf %110, %113 : vector<8x8xf32>
    %115 = math.exp %114 : vector<8x8xf32>
    %cst_38 = arith.constant dense<0.000000e+00> : vector<8xf32>
    %116 = vector.multi_reduction <add>, %115, %cst_38 [1] : vector<8x8xf32> to vector<8xf32>
    %117 = vector.shape_cast %116 : vector<8xf32> to vector<8x1xf32>
    %118 = tpu.reciprocal %117 {approx = true} : vector<8x1xf32> -> vector<8x1xf32>
    %119 = vector.broadcast %118 : vector<8x1xf32> to vector<8x8xf32>
    %120 = arith.mulf %115, %119 : vector<8x8xf32>
    %121 = arith.truncf %120 : vector<8x8xf32> to vector<8x8xbf16>
    %122 = arith.truncf %103 : vector<8x8xf32> to vector<8x8xbf16>
    %cst_39 = arith.constant dense<0.000000e+00> : vector<8x8xf32>
    %123 = tpu.matmul %121, %122, %cst_39 {dimension_numbers = #tpu.dot_dimension_numbers<[1], [0], [0], [1], [0, 0, 1, 1], [], []>} : vector<8x8xbf16>, vector<8x8xbf16>, vector<8x8xf32> -> vector<8x8xf32>
    %124 = arith.truncf %123 : vector<8x8xf32> to vector<8x8xbf16>
    %125 = vector.extract_strided_slice %15 {offsets = [24, 0], sizes = [8, 32], strides = [1, 1]} : vector<32x32xbf16> to vector<8x32xbf16>
    %cst_40 = arith.constant dense<0.000000e+00> : vector<8x32xf32>
    %126 = tpu.matmul %124, %125, %cst_40 {dimension_numbers = #tpu.dot_dimension_numbers<[1], [0], [0], [1], [0, 0, 1, 1], [], []>} : vector<8x8xbf16>, vector<8x32xbf16>, vector<8x32xf32> -> vector<8x32xf32>
    %127 = arith.addf %100, %126 : vector<8x32xf32>
    %c0_41 = arith.constant 0 : index
    %c0_42 = arith.constant 0 : index
    %c0_43 = arith.constant 0 : index
    %128 = vector.load %arg8[%c0_41, %c0_42, %c0_43] : memref<1x1x32xf32, #tpu.memory_space<vmem>>, vector<1x1x32xf32>
    %129 = vector.shape_cast %128 : vector<1x1x32xf32> to vector<1x32xf32>
    %c0_44 = arith.constant 0 : index
    %c0_45 = arith.constant 0 : index
    %c0_46 = arith.constant 0 : index
    %130 = vector.load %arg9[%c0_44, %c0_45, %c0_46] : memref<1x1x32xf32, #tpu.memory_space<vmem>>, vector<1x1x32xf32>
    %131 = vector.shape_cast %130 : vector<1x1x32xf32> to vector<1x32xf32>
    %cst_47 = arith.constant dense<0.000000e+00> : vector<8xf32>
    %132 = vector.multi_reduction <add>, %127, %cst_47 [1] : vector<8x32xf32> to vector<8xf32>
    %133 = vector.shape_cast %132 : vector<8xf32> to vector<8x1xf32>
    %cst_48 = arith.constant 3.200000e+01 : f32
    %134 = vector.broadcast %cst_48 : f32 to vector<8x1xf32>
    %135 = arith.divf %133, %134 : vector<8x1xf32>
    %136 = vector.broadcast %135 : vector<8x1xf32> to vector<8x32xf32>
    %137 = arith.subf %127, %136 : vector<8x32xf32>
    %138 = arith.mulf %137, %137 : vector<8x32xf32>
    %cst_49 = arith.constant dense<0.000000e+00> : vector<8xf32>
    %139 = vector.multi_reduction <add>, %138, %cst_49 [1] : vector<8x32xf32> to vector<8xf32>
    %140 = vector.shape_cast %139 : vector<8xf32> to vector<8x1xf32>
    %cst_50 = arith.constant 3.200000e+01 : f32
    %141 = vector.broadcast %cst_50 : f32 to vector<8x1xf32>
    %142 = arith.divf %140, %141 : vector<8x1xf32>
    %cst_51 = arith.constant 9.99999974E-6 : f32
    %143 = vector.broadcast %cst_51 : f32 to vector<8x1xf32>
    %144 = arith.addf %142, %143 : vector<8x1xf32>
    %145 = math.rsqrt %144 : vector<8x1xf32>
    %146 = vector.broadcast %145 : vector<8x1xf32> to vector<8x32xf32>
    %147 = arith.mulf %137, %146 : vector<8x32xf32>
    %148 = vector.broadcast %129 : vector<1x32xf32> to vector<8x32xf32>
    %149 = arith.mulf %147, %148 : vector<8x32xf32>
    %150 = vector.broadcast %131 : vector<1x32xf32> to vector<8x32xf32>
    %151 = arith.addf %149, %150 : vector<8x32xf32>
    %152 = arith.truncf %151 : vector<8x32xf32> to vector<8x32xbf16>
    %c0_52 = arith.constant 0 : index
    %c0_53 = arith.constant 0 : index
    %c0_54 = arith.constant 0 : index
    %153 = vector.load %arg10[%c0_52, %c0_53, %c0_54] : memref<1x32x64xbf16, #tpu.memory_space<vmem>>, vector<1x32x64xbf16>
    %154 = vector.shape_cast %153 : vector<1x32x64xbf16> to vector<32x64xbf16>
    %cst_55 = arith.constant dense<0.000000e+00> : vector<8x64xf32>
    %155 = tpu.matmul %152, %154, %cst_55 {dimension_numbers = #tpu.dot_dimension_numbers<[1], [0], [0], [1], [0, 0, 1, 1], [], []>} : vector<8x32xbf16>, vector<32x64xbf16>, vector<8x64xf32> -> vector<8x64xf32>
    %c0_56 = arith.constant 0 : index
    %c0_57 = arith.constant 0 : index
    %c0_58 = arith.constant 0 : index
    %156 = vector.load %arg11[%c0_56, %c0_57, %c0_58] : memref<1x1x64xf32, #tpu.memory_space<vmem>>, vector<1x1x64xf32>
    %157 = vector.shape_cast %156 : vector<1x1x64xf32> to vector<1x64xf32>
    %158 = vector.broadcast %157 : vector<1x64xf32> to vector<8x64xf32>
    %159 = arith.addf %155, %158 : vector<8x64xf32>
    %cst_59 = arith.constant 0.000000e+00 : f32
    %160 = vector.broadcast %cst_59 : f32 to vector<8x64xf32>
    %161 = arith.maximumf %159, %160 : vector<8x64xf32>
    %162 = arith.truncf %161 : vector<8x64xf32> to vector<8x64xbf16>
    %c0_60 = arith.constant 0 : index
    %c0_61 = arith.constant 0 : index
    %c0_62 = arith.constant 0 : index
    %163 = vector.load %arg12[%c0_60, %c0_61, %c0_62] : memref<1x64x32xbf16, #tpu.memory_space<vmem>>, vector<1x64x32xbf16>
    %164 = vector.shape_cast %163 : vector<1x64x32xbf16> to vector<64x32xbf16>
    %cst_63 = arith.constant dense<0.000000e+00> : vector<8x32xf32>
    %165 = tpu.matmul %162, %164, %cst_63 {dimension_numbers = #tpu.dot_dimension_numbers<[1], [0], [0], [1], [0, 0, 1, 1], [], []>} : vector<8x64xbf16>, vector<64x32xbf16>, vector<8x32xf32> -> vector<8x32xf32>
    %c0_64 = arith.constant 0 : index
    %c0_65 = arith.constant 0 : index
    %c0_66 = arith.constant 0 : index
    %166 = vector.load %arg13[%c0_64, %c0_65, %c0_66] : memref<1x1x32xf32, #tpu.memory_space<vmem>>, vector<1x1x32xf32>
    %167 = vector.shape_cast %166 : vector<1x1x32xf32> to vector<1x32xf32>
    %168 = vector.broadcast %167 : vector<1x32xf32> to vector<8x32xf32>
    %169 = arith.addf %165, %168 : vector<8x32xf32>
    %170 = arith.addf %169, %151 : vector<8x32xf32>
    %c0_67 = arith.constant 0 : index
    %c0_68 = arith.constant 0 : index
    %c0_69 = arith.constant 0 : index
    %171 = vector.load %arg14[%c0_67, %c0_68, %c0_69] : memref<1x1x32xf32, #tpu.memory_space<vmem>>, vector<1x1x32xf32>
    %172 = vector.shape_cast %171 : vector<1x1x32xf32> to vector<1x32xf32>
    %c0_70 = arith.constant 0 : index
    %c0_71 = arith.constant 0 : index
    %c0_72 = arith.constant 0 : index
    %173 = vector.load %arg15[%c0_70, %c0_71, %c0_72] : memref<1x1x32xf32, #tpu.memory_space<vmem>>, vector<1x1x32xf32>
    %174 = vector.shape_cast %173 : vector<1x1x32xf32> to vector<1x32xf32>
    %cst_73 = arith.constant dense<0.000000e+00> : vector<8xf32>
    %175 = vector.multi_reduction <add>, %170, %cst_73 [1] : vector<8x32xf32> to vector<8xf32>
    %176 = vector.shape_cast %175 : vector<8xf32> to vector<8x1xf32>
    %cst_74 = arith.constant 3.200000e+01 : f32
    %177 = vector.broadcast %cst_74 : f32 to vector<8x1xf32>
    %178 = arith.divf %176, %177 : vector<8x1xf32>
    %179 = vector.broadcast %178 : vector<8x1xf32> to vector<8x32xf32>
    %180 = arith.subf %170, %179 : vector<8x32xf32>
    %181 = arith.mulf %180, %180 : vector<8x32xf32>
    %cst_75 = arith.constant dense<0.000000e+00> : vector<8xf32>
    %182 = vector.multi_reduction <add>, %181, %cst_75 [1] : vector<8x32xf32> to vector<8xf32>
    %183 = vector.shape_cast %182 : vector<8xf32> to vector<8x1xf32>
    %cst_76 = arith.constant 3.200000e+01 : f32
    %184 = vector.broadcast %cst_76 : f32 to vector<8x1xf32>
    %185 = arith.divf %183, %184 : vector<8x1xf32>
    %cst_77 = arith.constant 9.99999974E-6 : f32
    %186 = vector.broadcast %cst_77 : f32 to vector<8x1xf32>
    %187 = arith.addf %185, %186 : vector<8x1xf32>
    %188 = math.rsqrt %187 : vector<8x1xf32>
    %189 = vector.broadcast %188 : vector<8x1xf32> to vector<8x32xf32>
    %190 = arith.mulf %180, %189 : vector<8x32xf32>
    %191 = vector.broadcast %172 : vector<1x32xf32> to vector<8x32xf32>
    %192 = arith.mulf %190, %191 : vector<8x32xf32>
    %193 = vector.broadcast %174 : vector<1x32xf32> to vector<8x32xf32>
    %194 = arith.addf %192, %193 : vector<8x32xf32>
    %c0_78 = arith.constant 0 : index
    %c0_79 = arith.constant 0 : index
    %195 = vector.load %arg19[%c0_78, %c0_79] : memref<8x32xf32, #tpu.memory_space<vmem>>, vector<8x32xf32>
    tpu.vector_store %arg19[%c0_78, %c0_79], %194 {strides = array<i32>} : memref<8x32xf32, #tpu.memory_space<vmem>>, vector<8x32xf32>,
    %c1_i32 = arith.constant 1 : i32
    %196 = arith.cmpi eq, %arg1, %c1_i32 : i32
    %197 = arith.extui %196 : i1 to i32
    %c0_i32_80 = arith.constant 0 : i32
    %198 = arith.cmpi ne, %197, %c0_i32_80 : i32
    scf.if %198 {
      %c0_81 = arith.constant 0 : index
      %c0_82 = arith.constant 0 : index
      %199 = vector.load %arg16[%c0_81, %c0_82] : memref<1x32xf32, #tpu.memory_space<vmem>>, vector<1x32xf32>
      %c0_83 = arith.constant 0 : index
      %c0_84 = arith.constant 0 : index
      %200 = vector.load %arg17[%c0_83, %c0_84] : memref<1x32xf32, #tpu.memory_space<vmem>>, vector<1x32xf32>
      %cst_85 = arith.constant dense<0.000000e+00> : vector<8xf32>
      %201 = vector.multi_reduction <add>, %194, %cst_85 [1] : vector<8x32xf32> to vector<8xf32>
      %202 = vector.shape_cast %201 : vector<8xf32> to vector<8x1xf32>
      %cst_86 = arith.constant 3.200000e+01 : f32
      %203 = vector.broadcast %cst_86 : f32 to vector<8x1xf32>
      %204 = arith.divf %202, %203 : vector<8x1xf32>
      %205 = vector.broadcast %204 : vector<8x1xf32> to vector<8x32xf32>
      %206 = arith.subf %194, %205 : vector<8x32xf32>
      %207 = arith.mulf %206, %206 : vector<8x32xf32>
      %cst_87 = arith.constant dense<0.000000e+00> : vector<8xf32>
      %208 = vector.multi_reduction <add>, %207, %cst_87 [1] : vector<8x32xf32> to vector<8xf32>
      %209 = vector.shape_cast %208 : vector<8xf32> to vector<8x1xf32>
      %cst_88 = arith.constant 3.200000e+01 : f32
      %210 = vector.broadcast %cst_88 : f32 to vector<8x1xf32>
      %211 = arith.divf %209, %210 : vector<8x1xf32>
      %cst_89 = arith.constant 9.99999974E-6 : f32
      %212 = vector.broadcast %cst_89 : f32 to vector<8x1xf32>
      %213 = arith.addf %211, %212 : vector<8x1xf32>
      %214 = math.rsqrt %213 : vector<8x1xf32>
      %215 = vector.broadcast %214 : vector<8x1xf32> to vector<8x32xf32>
      %216 = arith.mulf %206, %215 : vector<8x32xf32>
      %217 = vector.broadcast %199 : vector<1x32xf32> to vector<8x32xf32>
      %218 = arith.mulf %216, %217 : vector<8x32xf32>
      %219 = vector.broadcast %200 : vector<1x32xf32> to vector<8x32xf32>
      %220 = arith.addf %218, %219 : vector<8x32xf32>
      %c0_90 = arith.constant 0 : index
      %c0_91 = arith.constant 0 : index
      %c0_92 = arith.constant 0 : index
      %221 = vector.load %arg18[%c0_90, %c0_91, %c0_92] : memref<1x8x32xf32, #tpu.memory_space<vmem>>, vector<1x8x32xf32>
      %222 = vector.shape_cast %221 : vector<1x8x32xf32> to vector<8x32xf32>
      %223 = vector.shape_cast %220 : vector<8x32xf32> to vector<1x8x32xf32>
      tpu.vector_store %arg18[%c0_90, %c0_91, %c0_92], %223 {strides = array<i32>} : memref<1x8x32xf32, #tpu.memory_space<vmem>>, vector<1x8x32xf32>,
    } else {
    }
    return
  }
  func.func @transform_0(%arg0: i32, %arg1: i32) -> (i32, i32, i32) {
    %c0_i32 = arith.constant 0 : i32
    %c0_i32_0 = arith.constant 0 : i32
    %c0_i32_1 = arith.constant 0 : i32
    return %arg0, %c0_i32, %c0_i32_0 : i32, i32, i32
  }
  func.func @transform_1(%arg0: i32, %arg1: i32) -> (i32, i32, i32) {
    %c0_i32 = arith.constant 0 : i32
    %c0_i32_0 = arith.constant 0 : i32
    %c0_i32_1 = arith.constant 0 : i32
    return %arg0, %c0_i32, %c0_i32_0 : i32, i32, i32
  }
  func.func @transform_2(%arg0: i32, %arg1: i32) -> (i32, i32, i32) {
    %c0_i32 = arith.constant 0 : i32
    %c0_i32_0 = arith.constant 0 : i32
    %c0_i32_1 = arith.constant 0 : i32
    return %arg1, %c0_i32, %c0_i32_0 : i32, i32, i32
  }
  func.func @transform_3(%arg0: i32, %arg1: i32) -> (i32, i32, i32) {
    %c0_i32 = arith.constant 0 : i32
    %c0_i32_0 = arith.constant 0 : i32
    %c0_i32_1 = arith.constant 0 : i32
    return %arg1, %c0_i32, %c0_i32_0 : i32, i32, i32
  }
  func.func @transform_4(%arg0: i32, %arg1: i32) -> (i32, i32, i32) {
    %c0_i32 = arith.constant 0 : i32
    %c0_i32_0 = arith.constant 0 : i32
    %c0_i32_1 = arith.constant 0 : i32
    return %arg1, %c0_i32, %c0_i32_0 : i32, i32, i32
  }
  func.func @transform_5(%arg0: i32, %arg1: i32) -> (i32, i32, i32) {
    %c0_i32 = arith.constant 0 : i32
    %c0_i32_0 = arith.constant 0 : i32
    %c0_i32_1 = arith.constant 0 : i32
    return %arg1, %c0_i32, %c0_i32_0 : i32, i32, i32
  }
  func.func @transform_6(%arg0: i32, %arg1: i32) -> (i32, i32, i32) {
    %c0_i32 = arith.constant 0 : i32
    %c0_i32_0 = arith.constant 0 : i32
    %c0_i32_1 = arith.constant 0 : i32
    return %arg1, %c0_i32, %c0_i32_0 : i32, i32, i32
  }
  func.func @transform_7(%arg0: i32, %arg1: i32) -> (i32, i32, i32) {
    %c0_i32 = arith.constant 0 : i32
    %c0_i32_0 = arith.constant 0 : i32
    %c0_i32_1 = arith.constant 0 : i32
    return %arg1, %c0_i32, %c0_i32_0 : i32, i32, i32
  }
  func.func @transform_8(%arg0: i32, %arg1: i32) -> (i32, i32, i32) {
    %c0_i32 = arith.constant 0 : i32
    %c0_i32_0 = arith.constant 0 : i32
    %c0_i32_1 = arith.constant 0 : i32
    return %arg1, %c0_i32, %c0_i32_0 : i32, i32, i32
  }
  func.func @transform_9(%arg0: i32, %arg1: i32) -> (i32, i32, i32) {
    %c0_i32 = arith.constant 0 : i32
    %c0_i32_0 = arith.constant 0 : i32
    %c0_i32_1 = arith.constant 0 : i32
    return %arg1, %c0_i32, %c0_i32_0 : i32, i32, i32
  }
  func.func @transform_10(%arg0: i32, %arg1: i32) -> (i32, i32, i32) {
    %c0_i32 = arith.constant 0 : i32
    %c0_i32_0 = arith.constant 0 : i32
    %c0_i32_1 = arith.constant 0 : i32
    return %arg1, %c0_i32, %c0_i32_0 : i32, i32, i32
  }
  func.func @transform_11(%arg0: i32, %arg1: i32) -> (i32, i32, i32) {
    %c0_i32 = arith.constant 0 : i32
    %c0_i32_0 = arith.constant 0 : i32
    %c0_i32_1 = arith.constant 0 : i32
    return %arg1, %c0_i32, %c0_i32_0 : i32, i32, i32
  }
  func.func @transform_12(%arg0: i32, %arg1: i32) -> (i32, i32, i32) {
    %c0_i32 = arith.constant 0 : i32
    %c0_i32_0 = arith.constant 0 : i32
    %c0_i32_1 = arith.constant 0 : i32
    return %arg1, %c0_i32, %c0_i32_0 : i32, i32, i32
  }
  func.func @transform_13(%arg0: i32, %arg1: i32) -> (i32, i32, i32) {
    %c0_i32 = arith.constant 0 : i32
    %c0_i32_0 = arith.constant 0 : i32
    %c0_i32_1 = arith.constant 0 : i32
    return %arg1, %c0_i32, %c0_i32_0 : i32, i32, i32
  }
  func.func @transform_14(%arg0: i32, %arg1: i32) -> (i32, i32) {
    %c0_i32 = arith.constant 0 : i32
    %c0_i32_0 = arith.constant 0 : i32
    %c0_i32_1 = arith.constant 0 : i32
    return %c0_i32, %c0_i32_0 : i32, i32
  }
  func.func @transform_15(%arg0: i32, %arg1: i32) -> (i32, i32) {
    %c0_i32 = arith.constant 0 : i32
    %c0_i32_0 = arith.constant 0 : i32
    %c0_i32_1 = arith.constant 0 : i32
    return %c0_i32, %c0_i32_0 : i32, i32
  }
  func.func @transform_16(%arg0: i32, %arg1: i32) -> (i32, i32, i32) {
    %c0_i32 = arith.constant 0 : i32
    %c0_i32_0 = arith.constant 0 : i32
    %c0_i32_1 = arith.constant 0 : i32
    return %arg0, %c0_i32, %c0_i32_0 : i32, i32, i32
  }
}

</mosaic_0001>

<llo_original>
// kernel: encoder_forward.1
$region0: #{encoder_forward.1}
  #allocation0 [shape = 'u32[]', space=smem, size = 0x4, offset = 0x4, fixed_abs, tag = 'smem constant byte address 0x4 - core index']
  #allocation1 [shape = 'u32[144,128]{1,0:T(1,128)}', space=vmem, size = 0x12000, scoped, tag = 'internal scratch']
  #allocation2 [shape = 'f32[8,32]{1,0:T(8,128)}', space=vmem, size = 0x1000, scoped, tag = 'scratch operand']
  %s0 = inlined_call_operand.vmem [shape: f32[2,8,32], index: 0, kind: input, shape index: {}]
  %s1 = inlined_call_operand.vmem [shape: f32[2,1,8], index: 1, kind: input, shape index: {}]
  %s2 = inlined_call_operand.vmem [shape: bf16[2,32,96], index: 2, kind: input, shape index: {}]
  %s3 = inlined_call_operand.vmem [shape: f32[2,1,96], index: 3, kind: input, shape index: {}]
  %s4 = inlined_call_operand.vmem [shape: bf16[2,32,32], index: 4, kind: input, shape index: {}]
  %s5 = inlined_call_operand.vmem [shape: f32[2,1,32], index: 5, kind: input, shape index: {}]
  %s6 = inlined_call_operand.vmem [shape: f32[2,1,32], index: 6, kind: input, shape index: {}]
  %s7 = inlined_call_operand.vmem [shape: f32[2,1,32], index: 7, kind: input, shape index: {}]
  %s8 = inlined_call_operand.vmem [shape: bf16[2,32,64], index: 8, kind: input, shape index: {}]
  %s9 = inlined_call_operand.vmem [shape: f32[2,1,64], index: 9, kind: input, shape index: {}]
  %s10 = inlined_call_operand.vmem [shape: bf16[2,64,32], index: 10, kind: input, shape index: {}]
  %s11 = inlined_call_operand.vmem [shape: f32[2,1,32], index: 11, kind: input, shape index: {}]
  %s12 = inlined_call_operand.vmem [shape: f32[2,1,32], index: 12, kind: input, shape index: {}]
  %s13 = inlined_call_operand.vmem [shape: f32[2,1,32], index: 13, kind: input, shape index: {}]
  %s14 = inlined_call_operand.vmem [shape: f32[1,32], index: 14, kind: input, shape index: {}]
  %s15 = inlined_call_operand.vmem [shape: f32[1,32], index: 15, kind: input, shape index: {}]
  %s16 = inlined_call_operand.hbm [shape: f32[2,8,32], index: 16, kind: output, shape index: {}]
  %s17 = sld [smem:[#allocation0]]
  $region105: #{encoder_forward.1} parent=0
    _
  %s19 = ssub.s32 1, %s17
  %s20 = scalar_select 0, %s19, %s17
  $region1: #{encoder_forward.1} parent=0
    #allocation3 [shape = 'u8[8192]{0}', space=vmem, size = 0x2000, scoped, tag = 'output window, operand 0']
    #allocation4 [shape = 's32[2]{0}', space=sflag, size = 0x8, scoped, tag = 'scoped memory for encoder_forward.1']
    %21 = vsyncpa [#allocation4], 0
    %s22 = scalar_lea.sflag [#allocation4], 1
    %23 = vsyncpa %s22, 0
    loop: start=0, step=1, limit=6
    $region2: #{encoder_forward.1} parent=1 // loop_pre_header
      _
    $region3: #{encoder_forward.1} parent=1 // loop_header
      %s25 = sphi 0, %s29
      %p26 = scmp.ge.s32.totalorder %s25, 6
      %s32 = sphi 0, %s44
      %s33 = sphi 0, %s40
      %s34 = sphi 0, %s32
      %s35 = sphi 0, %s33
      %s36 = sphi 0, %s34
      %s37 = sphi 0, %s35
      %s47 = sphi 0, %s49
      %s50 = sphi 0, %s47
      %s51 = sphi 0, %s50
      %s67 = sphi 0, %s51
      %s73 = sphi 0, %s75
      %s76 = sphi 0, %s73
      %s77 = sphi 0, %s76
      %s93 = sphi 0, %s77
      %s99 = sphi 0, %s101
      %s102 = sphi 0, %s99
      %s103 = sphi 0, %s102
      %s119 = sphi 0, %s103
      %s125 = sphi 0, %s127
      %s128 = sphi 0, %s125
      %s129 = sphi 0, %s128
      %s145 = sphi 0, %s129
      %s151 = sphi 0, %s153
      %s154 = sphi 0, %s151
      %s155 = sphi 0, %s154
      %s171 = sphi 0, %s155
      %s177 = sphi 0, %s179
      %s180 = sphi 0, %s177
      %s181 = sphi 0, %s180
      %s197 = sphi 0, %s181
      %s203 = sphi 0, %s205
      %s206 = sphi 0, %s203
      %s207 = sphi 0, %s206
      %s223 = sphi 0, %s207
      %s229 = sphi 0, %s231
      %s232 = sphi 0, %s229
      %s233 = sphi 0, %s232
      %s249 = sphi 0, %s233
      %s255 = sphi 0, %s257
      %s258 = sphi 0, %s255
      %s259 = sphi 0, %s258
      %s275 = sphi 0, %s259
      %s281 = sphi 0, %s283
      %s284 = sphi 0, %s281
      %s285 = sphi 0, %s284
      %s301 = sphi 0, %s285
      %s307 = sphi 0, %s309
      %s310 = sphi 0, %s307
      %s311 = sphi 0, %s310
      %s327 = sphi 0, %s311
      %s333 = sphi 0, %s335
      %s336 = sphi 0, %s333
      %s337 = sphi 0, %s336
      %s353 = sphi 0, %s337
      %s359 = sphi 0, %s361
      %s362 = sphi 0, %s359
      %s363 = sphi 0, %s362
      %s379 = sphi 0, %s363
      %s385 = sphi 0, %s387
      %s388 = sphi 0, %s385
      %s389 = sphi 0, %s388
      %s405 = sphi 0, %s389
      %s409 = sphi 0, %s409
      %s411 = sphi 0, %s409
      %s412 = sphi 0, %s411
      %s426 = sphi 0, %s412
      %s430 = sphi 0, %s430
      %s432 = sphi 0, %s430
      %s433 = sphi 0, %s432
      %s447 = sphi 0, %s433
      %s453 = sphi 0, %s455
      %s456 = sphi 0, %s453
      %s457 = sphi 0, %s456
      %s473 = sphi 0, %s457
    $region4: #{encoder_forward.1} parent=1 // loop_header_branch
      %28 = sbr.rel (%p26) target = $region8
    $region5: #{encoder_forward.1} parent=1 // loop_body
      %s30 = ssub.s32 %s25, 1
      %s31 = ssub.s32 %s25, 2
      %s38 = sadd.s32 1, %s33
      %p39 = scmp.ge.s32.totalorder %s38, 2
      %s40 = scalar_select %p39, 0, %s38
      %s41 = sadd.s32 1, %s32
      %s42 = scalar_select %p39, %s41, %s32
      %p43 = scmp.ge.s32.totalorder %s42, 2
      %s44 = scalar_select %p43, 0, %s42
      %s45 = ssub.s32 %s32, %s44
      %p46 = scmp.eq.s32.totalorder %s45, 0
      %s48 = sadd.s32 %s47, 1
      %s49 = scalar_select %p46, %s47, %s48
      %p52 = pneg %p46
      %p53 = scmp.eq.s32.totalorder %s25, 3
      %p54 = por %p52, %p53
      %p55 = scmp.ne.s32.totalorder %s47, %s50
      %p56 = scmp.eq.s32.totalorder %s25, 0
      %p57 = por %p55, %p56
      %p58 = scmp.ne.s32.totalorder %s47, %s50
      %p59 = scmp.eq.s32.totalorder %s30, 3
      %p60 = por %p58, %p59
      %p61 = scmp.ne.s32.totalorder %s50, %s51
      %p62 = scmp.eq.s32.totalorder %s30, 0
      %p63 = por %p61, %p62
      %p64 = scmp.ne.s32.totalorder %s50, %s51
      %p65 = scmp.eq.s32.totalorder %s31, 3
      %p66 = por %p64, %p65
      %p68 = scmp.ne.s32.totalorder %s51, %s67
      %p69 = scmp.eq.s32.totalorder %s31, 0
      %p70 = por %p68, %p69
      %s71 = ssub.s32 %s32, %s44
      %p72 = scmp.eq.s32.totalorder %s71, 0
      %s74 = sadd.s32 %s73, 1
      %s75 = scalar_select %p72, %s73, %s74
      %p78 = pneg %p72
      %p79 = scmp.eq.s32.totalorder %s25, 3
      %p80 = por %p78, %p79
      %p81 = scmp.ne.s32.totalorder %s73, %s76
      %p82 = scmp.eq.s32.totalorder %s25, 0
      %p83 = por %p81, %p82
      %p84 = scmp.ne.s32.totalorder %s73, %s76
      %p85 = scmp.eq.s32.totalorder %s30, 3
      %p86 = por %p84, %p85
      %p87 = scmp.ne.s32.totalorder %s76, %s77
      %p88 = scmp.eq.s32.totalorder %s30, 0
      %p89 = por %p87, %p88
      %p90 = scmp.ne.s32.totalorder %s76, %s77
      %p91 = scmp.eq.s32.totalorder %s31, 3
      %p92 = por %p90, %p91
      %p94 = scmp.ne.s32.totalorder %s77, %s93
      %p95 = scmp.eq.s32.totalorder %s31, 0
      %p96 = por %p94, %p95
      %s97 = ssub.s32 %s33, %s40
      %p98 = scmp.eq.s32.totalorder %s97, 0
      %s100 = sadd.s32 %s99, 1
      %s101 = scalar_select %p98, %s99, %s100
      %p104 = pneg %p98
      %p105 = scmp.eq.s32.totalorder %s25, 3
      %p106 = por %p104, %p105
      %p107 = scmp.ne.s32.totalorder %s99, %s102
      %p108 = scmp.eq.s32.totalorder %s25, 0
      %p109 = por %p107, %p108
      %p110 = scmp.ne.s32.totalorder %s99, %s102
      %p111 = scmp.eq.s32.totalorder %s30, 3
      %p112 = por %p110, %p111
      %p113 = scmp.ne.s32.totalorder %s102, %s103
      %p114 = scmp.eq.s32.totalorder %s30, 0
      %p115 = por %p113, %p114
      %p116 = scmp.ne.s32.totalorder %s102, %s103
      %p117 = scmp.eq.s32.totalorder %s31, 3
      %p118 = por %p116, %p117
      %p120 = scmp.ne.s32.totalorder %s103, %s119
      %p121 = scmp.eq.s32.totalorder %s31, 0
      %p122 = por %p120, %p121
      %s123 = ssub.s32 %s33, %s40
      %p124 = scmp.eq.s32.totalorder %s123, 0
      %s126 = sadd.s32 %s125, 1
      %s127 = scalar_select %p124, %s125, %s126
      %p130 = pneg %p124
      %p131 = scmp.eq.s32.totalorder %s25, 3
      %p132 = por %p130, %p131
      %p133 = scmp.ne.s32.totalorder %s125, %s128
      %p134 = scmp.eq.s32.totalorder %s25, 0
      %p135 = por %p133, %p134
      %p136 = scmp.ne.s32.totalorder %s125, %s128
      %p137 = scmp.eq.s32.totalorder %s30, 3
      %p138 = por %p136, %p137
      %p139 = scmp.ne.s32.totalorder %s128, %s129
      %p140 = scmp.eq.s32.totalorder %s30, 0
      %p141 = por %p139, %p140
      %p142 = scmp.ne.s32.totalorder %s128, %s129
      %p143 = scmp.eq.s32.totalorder %s31, 3
      %p144 = por %p142, %p143
      %p146 = scmp.ne.s32.totalorder %s129, %s145
      %p147 = scmp.eq.s32.totalorder %s31, 0
      %p148 = por %p146, %p147
      %s149 = ssub.s32 %s33, %s40
      %p150 = scmp.eq.s32.totalorder %s149, 0
      %s152 = sadd.s32 %s151, 1
      %s153 = scalar_select %p150, %s151, %s152
      %p156 = pneg %p150
      %p157 = scmp.eq.s32.totalorder %s25, 3
      %p158 = por %p156, %p157
      %p159 = scmp.ne.s32.totalorder %s151, %s154
      %p160 = scmp.eq.s32.totalorder %s25, 0
      %p161 = por %p159, %p160
      %p162 = scmp.ne.s32.totalorder %s151, %s154
      %p163 = scmp.eq.s32.totalorder %s30, 3
      %p164 = por %p162, %p163
      %p165 = scmp.ne.s32.totalorder %s154, %s155
      %p166 = scmp.eq.s32.totalorder %s30, 0
      %p167 = por %p165, %p166
      %p168 = scmp.ne.s32.totalorder %s154, %s155
      %p169 = scmp.eq.s32.totalorder %s31, 3
      %p170 = por %p168, %p169
      %p172 = scmp.ne.s32.totalorder %s155, %s171
      %p173 = scmp.eq.s32.totalorder %s31, 0
      %p174 = por %p172, %p173
      %s175 = ssub.s32 %s33, %s40
      %p176 = scmp.eq.s32.totalorder %s175, 0
      %s178 = sadd.s32 %s177, 1
      %s179 = scalar_select %p176, %s177, %s178
      %p182 = pneg %p176
      %p183 = scmp.eq.s32.totalorder %s25, 3
      %p184 = por %p182, %p183
      %p185 = scmp.ne.s32.totalorder %s177, %s180
      %p186 = scmp.eq.s32.totalorder %s25, 0
      %p187 = por %p185, %p186
      %p188 = scmp.ne.s32.totalorder %s177, %s180
      %p189 = scmp.eq.s32.totalorder %s30, 3
      %p190 = por %p188, %p189
      %p191 = scmp.ne.s32.totalorder %s180, %s181
      %p192 = scmp.eq.s32.totalorder %s30, 0
      %p193 = por %p191, %p192
      %p194 = scmp.ne.s32.totalorder %s180, %s181
      %p195 = scmp.eq.s32.totalorder %s31, 3
      %p196 = por %p194, %p195
      %p198 = scmp.ne.s32.totalorder %s181, %s197
      %p199 = scmp.eq.s32.totalorder %s31, 0
      %p200 = por %p198, %p199
      %s201 = ssub.s32 %s33, %s40
      %p202 = scmp.eq.s32.totalorder %s201, 0
      %s204 = sadd.s32 %s203, 1
      %s205 = scalar_select %p202, %s203, %s204
      %p208 = pneg %p202
      %p209 = scmp.eq.s32.totalorder %s25, 3
      %p210 = por %p208, %p209
      %p211 = scmp.ne.s32.totalorder %s203, %s206
      %p212 = scmp.eq.s32.totalorder %s25, 0
      %p213 = por %p211, %p212
      %p214 = scmp.ne.s32.totalorder %s203, %s206
      %p215 = scmp.eq.s32.totalorder %s30, 3
      %p216 = por %p214, %p215
      %p217 = scmp.ne.s32.totalorder %s206, %s207
      %p218 = scmp.eq.s32.totalorder %s30, 0
      %p219 = por %p217, %p218
      %p220 = scmp.ne.s32.totalorder %s206, %s207
      %p221 = scmp.eq.s32.totalorder %s31, 3
      %p222 = por %p220, %p221
      %p224 = scmp.ne.s32.totalorder %s207, %s223
      %p225 = scmp.eq.s32.totalorder %s31, 0
      %p226 = por %p224, %p225
      %s227 = ssub.s32 %s33, %s40
      %p228 = scmp.eq.s32.totalorder %s227, 0
      %s230 = sadd.s32 %s229, 1
      %s231 = scalar_select %p228, %s229, %s230
      %p234 = pneg %p228
      %p235 = scmp.eq.s32.totalorder %s25, 3
      %p236 = por %p234, %p235
      %p237 = scmp.ne.s32.totalorder %s229, %s232
      %p238 = scmp.eq.s32.totalorder %s25, 0
      %p239 = por %p237, %p238
      %p240 = scmp.ne.s32.totalorder %s229, %s232
      %p241 = scmp.eq.s32.totalorder %s30, 3
      %p242 = por %p240, %p241
      %p243 = scmp.ne.s32.totalorder %s232, %s233
      %p244 = scmp.eq.s32.totalorder %s30, 0
      %p245 = por %p243, %p244
      %p246 = scmp.ne.s32.totalorder %s232, %s233
      %p247 = scmp.eq.s32.totalorder %s31, 3
      %p248 = por %p246, %p247
      %p250 = scmp.ne.s32.totalorder %s233, %s249
      %p251 = scmp.eq.s32.totalorder %s31, 0
      %p252 = por %p250, %p251
      %s253 = ssub.s32 %s33, %s40
      %p254 = scmp.eq.s32.totalorder %s253, 0
      %s256 = sadd.s32 %s255, 1
      %s257 = scalar_select %p254, %s255, %s256
      %p260 = pneg %p254
      %p261 = scmp.eq.s32.totalorder %s25, 3
      %p262 = por %p260, %p261
      %p263 = scmp.ne.s32.totalorder %s255, %s258
      %p264 = scmp.eq.s32.totalorder %s25, 0
      %p265 = por %p263, %p264
      %p266 = scmp.ne.s32.totalorder %s255, %s258
      %p267 = scmp.eq.s32.totalorder %s30, 3
      %p268 = por %p266, %p267
      %p269 = scmp.ne.s32.totalorder %s258, %s259
      %p270 = scmp.eq.s32.totalorder %s30, 0
      %p271 = por %p269, %p270
      %p272 = scmp.ne.s32.totalorder %s258, %s259
      %p273 = scmp.eq.s32.totalorder %s31, 3
      %p274 = por %p272, %p273
      %p276 = scmp.ne.s32.totalorder %s259, %s275
      %p277 = scmp.eq.s32.totalorder %s31, 0
      %p278 = por %p276, %p277
      %s279 = ssub.s32 %s33, %s40
      %p280 = scmp.eq.s32.totalorder %s279, 0
      %s282 = sadd.s32 %s281, 1
      %s283 = scalar_select %p280, %s281, %s282
      %p286 = pneg %p280
      %p287 = scmp.eq.s32.totalorder %s25, 3
      %p288 = por %p286, %p287
      %p289 = scmp.ne.s32.totalorder %s281, %s284
      %p290 = scmp.eq.s32.totalorder %s25, 0
      %p291 = por %p289, %p290
      %p292 = scmp.ne.s32.totalorder %s281, %s284
      %p293 = scmp.eq.s32.totalorder %s30, 3
      %p294 = por %p292, %p293
      %p295 = scmp.ne.s32.totalorder %s284, %s285
      %p296 = scmp.eq.s32.totalorder %s30, 0
      %p297 = por %p295, %p296
      %p298 = scmp.ne.s32.totalorder %s284, %s285
      %p299 = scmp.eq.s32.totalorder %s31, 3
      %p300 = por %p298, %p299
      %p302 = scmp.ne.s32.totalorder %s285, %s301
      %p303 = scmp.eq.s32.totalorder %s31, 0
      %p304 = por %p302, %p303
      %s305 = ssub.s32 %s33, %s40
      %p306 = scmp.eq.s32.totalorder %s305, 0
      %s308 = sadd.s32 %s307, 1
      %s309 = scalar_select %p306, %s307, %s308
      %p312 = pneg %p306
      %p313 = scmp.eq.s32.totalorder %s25, 3
      %p314 = por %p312, %p313
      %p315 = scmp.ne.s32.totalorder %s307, %s310
      %p316 = scmp.eq.s32.totalorder %s25, 0
      %p317 = por %p315, %p316
      %p318 = scmp.ne.s32.totalorder %s307, %s310
      %p319 = scmp.eq.s32.totalorder %s30, 3
      %p320 = por %p318, %p319
      %p321 = scmp.ne.s32.totalorder %s310, %s311
      %p322 = scmp.eq.s32.totalorder %s30, 0
      %p323 = por %p321, %p322
      %p324 = scmp.ne.s32.totalorder %s310, %s311
      %p325 = scmp.eq.s32.totalorder %s31, 3
      %p326 = por %p324, %p325
      %p328 = scmp.ne.s32.totalorder %s311, %s327
      %p329 = scmp.eq.s32.totalorder %s31, 0
      %p330 = por %p328, %p329
      %s331 = ssub.s32 %s33, %s40
      %p332 = scmp.eq.s32.totalorder %s331, 0
      %s334 = sadd.s32 %s333, 1
      %s335 = scalar_select %p332, %s333, %s334
      %p338 = pneg %p332
      %p339 = scmp.eq.s32.totalorder %s25, 3
      %p340 = por %p338, %p339
      %p341 = scmp.ne.s32.totalorder %s333, %s336
      %p342 = scmp.eq.s32.totalorder %s25, 0
      %p343 = por %p341, %p342
      %p344 = scmp.ne.s32.totalorder %s333, %s336
      %p345 = scmp.eq.s32.totalorder %s30, 3
      %p346 = por %p344, %p345
      %p347 = scmp.ne.s32.totalorder %s336, %s337
      %p348 = scmp.eq.s32.totalorder %s30, 0
      %p349 = por %p347, %p348
      %p350 = scmp.ne.s32.totalorder %s336, %s337
      %p351 = scmp.eq.s32.totalorder %s31, 3
      %p352 = por %p350, %p351
      %p354 = scmp.ne.s32.totalorder %s337, %s353
      %p355 = scmp.eq.s32.totalorder %s31, 0
      %p356 = por %p354, %p355
      %s357 = ssub.s32 %s33, %s40
      %p358 = scmp.eq.s32.totalorder %s357, 0
      %s360 = sadd.s32 %s359, 1
      %s361 = scalar_select %p358, %s359, %s360
      %p364 = pneg %p358
      %p365 = scmp.eq.s32.totalorder %s25, 3
      %p366 = por %p364, %p365
      %p367 = scmp.ne.s32.totalorder %s359, %s362
      %p368 = scmp.eq.s32.totalorder %s25, 0
      %p369 = por %p367, %p368
      %p370 = scmp.ne.s32.totalorder %s359, %s362
      %p371 = scmp.eq.s32.totalorder %s30, 3
      %p372 = por %p370, %p371
      %p373 = scmp.ne.s32.totalorder %s362, %s363
      %p374 = scmp.eq.s32.totalorder %s30, 0
      %p375 = por %p373, %p374
      %p376 = scmp.ne.s32.totalorder %s362, %s363
      %p377 = scmp.eq.s32.totalorder %s31, 3
      %p378 = por %p376, %p377
      %p380 = scmp.ne.s32.totalorder %s363, %s379
      %p381 = scmp.eq.s32.totalorder %s31, 0
      %p382 = por %p380, %p381
      %s383 = ssub.s32 %s33, %s40
      %p384 = scmp.eq.s32.totalorder %s383, 0
      %s386 = sadd.s32 %s385, 1
      %s387 = scalar_select %p384, %s385, %s386
      %p390 = pneg %p384
      %p391 = scmp.eq.s32.totalorder %s25, 3
      %p392 = por %p390, %p391
      %p393 = scmp.ne.s32.totalorder %s385, %s388
      %p394 = scmp.eq.s32.totalorder %s25, 0
      %p395 = por %p393, %p394
      %p396 = scmp.ne.s32.totalorder %s385, %s388
      %p397 = scmp.eq.s32.totalorder %s30, 3
      %p398 = por %p396, %p397
      %p399 = scmp.ne.s32.totalorder %s388, %s389
      %p400 = scmp.eq.s32.totalorder %s30, 0
      %p401 = por %p399, %p400
      %p402 = scmp.ne.s32.totalorder %s388, %s389
      %p403 = scmp.eq.s32.totalorder %s31, 3
      %p404 = por %p402, %p403
      %p406 = scmp.ne.s32.totalorder %s389, %s405
      %p407 = scmp.eq.s32.totalorder %s31, 0
      %p408 = por %p406, %p407
      %s410 = sadd.s32 %s409, 1
      %p413 = scmp.eq.s32.totalorder %s25, 3
      %p414 = scmp.ne.s32.totalorder %s409, %s411
      %p415 = scmp.eq.s32.totalorder %s25, 0
      %p416 = por %p414, %p415
      %p417 = scmp.ne.s32.totalorder %s409, %s411
      %p418 = scmp.eq.s32.totalorder %s30, 3
      %p419 = por %p417, %p418
      %p420 = scmp.ne.s32.totalorder %s411, %s412
      %p421 = scmp.eq.s32.totalorder %s30, 0
      %p422 = por %p420, %p421
      %p423 = scmp.ne.s32.totalorder %s411, %s412
      %p424 = scmp.eq.s32.totalorder %s31, 3
      %p425 = por %p423, %p424
      %p427 = scmp.ne.s32.totalorder %s412, %s426
      %p428 = scmp.eq.s32.totalorder %s31, 0
      %p429 = por %p427, %p428
      %s431 = sadd.s32 %s430, 1
      %p434 = scmp.eq.s32.totalorder %s25, 3
      %p435 = scmp.ne.s32.totalorder %s430, %s432
      %p436 = scmp.eq.s32.totalorder %s25, 0
      %p437 = por %p435, %p436
      %p438 = scmp.ne.s32.totalorder %s430, %s432
      %p439 = scmp.eq.s32.totalorder %s30, 3
      %p440 = por %p438, %p439
      %p441 = scmp.ne.s32.totalorder %s432, %s433
      %p442 = scmp.eq.s32.totalorder %s30, 0
      %p443 = por %p441, %p442
      %p444 = scmp.ne.s32.totalorder %s432, %s433
      %p445 = scmp.eq.s32.totalorder %s31, 3
      %p446 = por %p444, %p445
      %p448 = scmp.ne.s32.totalorder %s433, %s447
      %p449 = scmp.eq.s32.totalorder %s31, 0
      %p450 = por %p448, %p449
      %s451 = ssub.s32 %s32, %s44
      %p452 = scmp.eq.s32.totalorder %s451, 0
      %s454 = sadd.s32 %s453, 1
      %s455 = scalar_select %p452, %s453, %s454
      %p458 = pneg %p452
      %p459 = scmp.eq.s32.totalorder %s25, 3
      %p460 = por %p458, %p459
      %p461 = scmp.ne.s32.totalorder %s453, %s456
      %p462 = scmp.eq.s32.totalorder %s25, 0
      %p463 = por %p461, %p462
      %p464 = scmp.ne.s32.totalorder %s453, %s456
      %p465 = scmp.eq.s32.totalorder %s30, 3
      %p466 = por %p464, %p465
      %p467 = scmp.ne.s32.totalorder %s456, %s457
      %p468 = scmp.eq.s32.totalorder %s30, 0
      %p469 = por %p467, %p468
      %p470 = scmp.ne.s32.totalorder %s456, %s457
      %p471 = scmp.eq.s32.totalorder %s31, 3
      %p472 = por %p470, %p471
      %p474 = scmp.ne.s32.totalorder %s457, %s473
      %p475 = scmp.eq.s32.totalorder %s31, 0
      %p476 = por %p474, %p475
      %p477 = scmp.le.s32.totalorder 1, %s25
      %p478 = scmp.lt.s32.totalorder %s25, 5
      %p479 = pnand %p477, %p478
      %p480 = pneg %p479
      // Predicated region
      $region9: #{encoder_forward.1} parent=5 // pred_check
        _
      $region10: #{encoder_forward.1} parent=5 // pred_check_branch
        %482 = sbr.rel (%p479) target = $region12
      $region11: #{encoder_forward.1} parent=5 // pred_region
        %s483 = ssub.s32 %s25, 1
        // Predicated region
        $region13: #{encoder_forward.1} parent=11 // pred_check
          %p484 = pneg %p422
        $region14: #{encoder_forward.1} parent=11 // pred_check_branch
          %486 = sbr.rel (%p484) target = $region16
        $region15: #{encoder_forward.1} parent=11 // pred_region
          _
        $region16: #{encoder_forward.1} parent=11 // pred_fallthru
          _
        // Predicated region
        $region17: #{encoder_forward.1} parent=11 // pred_check
          %p487 = pneg %p443
        $region18: #{encoder_forward.1} parent=11 // pred_check_branch
          %489 = sbr.rel (%p487) target = $region20
        $region19: #{encoder_forward.1} parent=11 // pred_region
          _
        $region20: #{encoder_forward.1} parent=11 // pred_fallthru
          _
      $region12: #{encoder_forward.1} parent=5 // pred_fallthru
        _
      %p490 = scmp.lt.s32.totalorder %s25, 4
      // Predicated region
      $region21: #{encoder_forward.1} parent=5 // pred_check
        %p491 = pneg %p490
      $region22: #{encoder_forward.1} parent=5 // pred_check_branch
        %493 = sbr.rel (%p491) target = $region24
      $region23: #{encoder_forward.1} parent=5 // pred_region
        // Predicated region
        $region25: #{encoder_forward.1} parent=23 // pred_check
          %p494 = pneg %p57
        $region26: #{encoder_forward.1} parent=23 // pred_check_branch
          %496 = sbr.rel (%p494) target = $region28
        $region27: #{encoder_forward.1} parent=23 // pred_region
          %p497 = scmp.lt.s32.totalorder %s32, 1
          %s498 = scalar_select %p497, %s32, 1
          %s499 = smul.addr %s498, 8
          %s500 = scalar_lea.vmem %s0, %s499
        $region28: #{encoder_forward.1} parent=23 // pred_fallthru
          _
        // Predicated region
        $region29: #{encoder_forward.1} parent=23 // pred_check
          %p501 = pneg %p83
        $region30: #{encoder_forward.1} parent=23 // pred_check_branch
          %503 = sbr.rel (%p501) target = $region32
        $region31: #{encoder_forward.1} parent=23 // pred_region
          %p504 = scmp.lt.s32.totalorder %s32, 1
          %s505 = scalar_select %p504, %s32, 1
          %s506 = scalar_lea.vmem %s1, %s505
        $region32: #{encoder_forward.1} parent=23 // pred_fallthru
          _
        // Predicated region
        $region33: #{encoder_forward.1} parent=23 // pred_check
          %p507 = pneg %p109
        $region34: #{encoder_forward.1} parent=23 // pred_check_branch
          %509 = sbr.rel (%p507) target = $region36
        $region35: #{encoder_forward.1} parent=23 // pred_region
          %p510 = scmp.lt.s32.totalorder %s33, 1
          %s511 = scalar_select %p510, %s33, 1
          %s512 = smul.addr %s511, 4
          %s513 = smul.addr %s512, 4
          %s514 = scalar_lea.vmem %s2, %s513
        $region36: #{encoder_forward.1} parent=23 // pred_fallthru
          _
        // Predicated region
        $region37: #{encoder_forward.1} parent=23 // pred_check
          %p515 = pneg %p135
        $region38: #{encoder_forward.1} parent=23 // pred_check_branch
          %517 = sbr.rel (%p515) target = $region40
        $region39: #{encoder_forward.1} parent=23 // pred_region
          %p518 = scmp.lt.s32.totalorder %s33, 1
          %s519 = scalar_select %p518, %s33, 1
          %s520 = scalar_lea.vmem %s3, %s519
        $region40: #{encoder_forward.1} parent=23 // pred_fallthru
          _
        // Predicated region
        $region41: #{encoder_forward.1} parent=23 // pred_check
          %p521 = pneg %p161
        $region42: #{encoder_forward.1} parent=23 // pred_check_branch
          %523 = sbr.rel (%p521) target = $region44
        $region43: #{encoder_forward.1} parent=23 // pred_region
          %p524 = scmp.lt.s32.totalorder %s33, 1
          %s525 = scalar_select %p524, %s33, 1
          %s526 = smul.addr %s525, 4
          %s527 = smul.addr %s526, 4
          %s528 = scalar_lea.vmem %s4, %s527
        $region44: #{encoder_forward.1} parent=23 // pred_fallthru
          _
        // Predicated region
        $region45: #{encoder_forward.1} parent=23 // pred_check
          %p529 = pneg %p187
        $region46: #{encoder_forward.1} parent=23 // pred_check_branch
          %531 = sbr.rel (%p529) target = $region48
        $region47: #{encoder_forward.1} parent=23 // pred_region
          %p532 = scmp.lt.s32.totalorder %s33, 1
          %s533 = scalar_select %p532, %s33, 1
          %s534 = scalar_lea.vmem %s5, %s533
        $region48: #{encoder_forward.1} parent=23 // pred_fallthru
          _
        // Predicated region
        $region49: #{encoder_forward.1} parent=23 // pred_check
          %p535 = pneg %p213
        $region50: #{encoder_forward.1} parent=23 // pred_check_branch
          %537 = sbr.rel (%p535) target = $region52
        $region51: #{encoder_forward.1} parent=23 // pred_region
          %p538 = scmp.lt.s32.totalorder %s33, 1
          %s539 = scalar_select %p538, %s33, 1
          %s540 = scalar_lea.vmem %s6, %s539
        $region52: #{encoder_forward.1} parent=23 // pred_fallthru
          _
        // Predicated region
        $region53: #{encoder_forward.1} parent=23 // pred_check
          %p541 = pneg %p239
        $region54: #{encoder_forward.1} parent=23 // pred_check_branch
          %543 = sbr.rel (%p541) target = $region56
        $region55: #{encoder_forward.1} parent=23 // pred_region
          %p544 = scmp.lt.s32.totalorder %s33, 1
          %s545 = scalar_select %p544, %s33, 1
          %s546 = scalar_lea.vmem %s7, %s545
        $region56: #{encoder_forward.1} parent=23 // pred_fallthru
          _
        // Predicated region
        $region57: #{encoder_forward.1} parent=23 // pred_check
          %p547 = pneg %p265
        $region58: #{encoder_forward.1} parent=23 // pred_check_branch
          %549 = sbr.rel (%p547) target = $region60
        $region59: #{encoder_forward.1} parent=23 // pred_region
          %p550 = scmp.lt.s32.totalorder %s33, 1
          %s551 = scalar_select %p550, %s33, 1
          %s552 = smul.addr %s551, 4
          %s553 = smul.addr %s552, 4
          %s554 = scalar_lea.vmem %s8, %s553
        $region60: #{encoder_forward.1} parent=23 // pred_fallthru
          _
        // Predicated region
        $region61: #{encoder_forward.1} parent=23 // pred_check
          %p555 = pneg %p291
        $region62: #{encoder_forward.1} parent=23 // pred_check_branch
          %557 = sbr.rel (%p555) target = $region64
        $region63: #{encoder_forward.1} parent=23 // pred_region
          %p558 = scmp.lt.s32.totalorder %s33, 1
          %s559 = scalar_select %p558, %s33, 1
          %s560 = scalar_lea.vmem %s9, %s559
        $region64: #{encoder_forward.1} parent=23 // pred_fallthru
          _
        // Predicated region
        $region65: #{encoder_forward.1} parent=23 // pred_check
          %p561 = pneg %p317
        $region66: #{encoder_forward.1} parent=23 // pred_check_branch
          %563 = sbr.rel (%p561) target = $region68
        $region67: #{encoder_forward.1} parent=23 // pred_region
          %p564 = scmp.lt.s32.totalorder %s33, 1
          %s565 = scalar_select %p564, %s33, 1
          %s566 = smul.addr %s565, 8
          %s567 = smul.addr %s566, 4
          %s568 = scalar_lea.vmem %s10, %s567
        $region68: #{encoder_forward.1} parent=23 // pred_fallthru
          _
        // Predicated region
        $region69: #{encoder_forward.1} parent=23 // pred_check
          %p569 = pneg %p343
        $region70: #{encoder_forward.1} parent=23 // pred_check_branch
          %571 = sbr.rel (%p569) target = $region72
        $region71: #{encoder_forward.1} parent=23 // pred_region
          %p572 = scmp.lt.s32.totalorder %s33, 1
          %s573 = scalar_select %p572, %s33, 1
          %s574 = scalar_lea.vmem %s11, %s573
        $region72: #{encoder_forward.1} parent=23 // pred_fallthru
          _
        // Predicated region
        $region73: #{encoder_forward.1} parent=23 // pred_check
          %p575 = pneg %p369
        $region74: #{encoder_forward.1} parent=23 // pred_check_branch
          %577 = sbr.rel (%p575) target = $region76
        $region75: #{encoder_forward.1} parent=23 // pred_region
          %p578 = scmp.lt.s32.totalorder %s33, 1
          %s579 = scalar_select %p578, %s33, 1
          %s580 = scalar_lea.vmem %s12, %s579
        $region76: #{encoder_forward.1} parent=23 // pred_fallthru
          _
        // Predicated region
        $region77: #{encoder_forward.1} parent=23 // pred_check
          %p581 = pneg %p395
        $region78: #{encoder_forward.1} parent=23 // pred_check_branch
          %583 = sbr.rel (%p581) target = $region80
        $region79: #{encoder_forward.1} parent=23 // pred_region
          %p584 = scmp.lt.s32.totalorder %s33, 1
          %s585 = scalar_select %p584, %s33, 1
          %s586 = scalar_lea.vmem %s13, %s585
        $region80: #{encoder_forward.1} parent=23 // pred_fallthru
          _
      $region24: #{encoder_forward.1} parent=5 // pred_fallthru
        _
      %p587 = scmp.le.s32.totalorder 1, %s25
      %p588 = scmp.lt.s32.totalorder %s25, 5
      %p589 = pnand %p587, %p588
      %p590 = pneg %p589
      // Predicated region
      $region81: #{encoder_forward.1} parent=5 // pred_check
        _
      $region82: #{encoder_forward.1} parent=5 // pred_check_branch
        %592 = sbr.rel (%p589) target = $region84
      $region83: #{encoder_forward.1} parent=5 // pred_region
        %s593 = ssub.s32 %s25, 1
        %p594 = scmp.lt.s32.totalorder %s34, 1
        %s595 = scalar_select %p594, %s34, 1
        %s596 = smul.addr %s595, 8
        %s597 = scalar_lea.vmem %s0, %s596
        %p598 = pneg %p63
        %p599 = pneg %p60
        %p600 = scmp.lt.s32.totalorder %s34, 1
        %s601 = scalar_select %p600, %s34, 1
        %s602 = scalar_lea.vmem %s1, %s601
        %p603 = pneg %p89
        %p604 = pneg %p86
        %p605 = scmp.lt.s32.totalorder %s35, 1
        %s606 = scalar_select %p605, %s35, 1
        %s607 = smul.addr %s606, 4
        %s608 = smul.addr %s607, 4
        %s609 = scalar_lea.vmem %s2, %s608
        %p610 = pneg %p115
        %p611 = pneg %p112
        %p612 = scmp.lt.s32.totalorder %s35, 1
        %s613 = scalar_select %p612, %s35, 1
        %s614 = scalar_lea.vmem %s3, %s613
        %p615 = pneg %p141
        %p616 = pneg %p138
        %p617 = scmp.lt.s32.totalorder %s35, 1
        %s618 = scalar_select %p617, %s35, 1
        %s619 = smul.addr %s618, 4
        %s620 = smul.addr %s619, 4
        %s621 = scalar_lea.vmem %s4, %s620
        %p622 = pneg %p167
        %p623 = pneg %p164
        %p624 = scmp.lt.s32.totalorder %s35, 1
        %s625 = scalar_select %p624, %s35, 1
        %s626 = scalar_lea.vmem %s5, %s625
        %p627 = pneg %p193
        %p628 = pneg %p190
        %p629 = scmp.lt.s32.totalorder %s35, 1
        %s630 = scalar_select %p629, %s35, 1
        %s631 = scalar_lea.vmem %s6, %s630
        %p632 = pneg %p219
        %p633 = pneg %p216
        %p634 = scmp.lt.s32.totalorder %s35, 1
        %s635 = scalar_select %p634, %s35, 1
        %s636 = scalar_lea.vmem %s7, %s635
        %p637 = pneg %p245
        %p638 = pneg %p242
        %p639 = scmp.lt.s32.totalorder %s35, 1
        %s640 = scalar_select %p639, %s35, 1
        %s641 = smul.addr %s640, 4
        %s642 = smul.addr %s641, 4
        %s643 = scalar_lea.vmem %s8, %s642
        %p644 = pneg %p271
        %p645 = pneg %p268
        %p646 = scmp.lt.s32.totalorder %s35, 1
        %s647 = scalar_select %p646, %s35, 1
        %s648 = scalar_lea.vmem %s9, %s647
        %p649 = pneg %p297
        %p650 = pneg %p294
        %p651 = scmp.lt.s32.totalorder %s35, 1
        %s652 = scalar_select %p651, %s35, 1
        %s653 = smul.addr %s652, 8
        %s654 = smul.addr %s653, 4
        %s655 = scalar_lea.vmem %s10, %s654
        %p656 = pneg %p323
        %p657 = pneg %p320
        %p658 = scmp.lt.s32.totalorder %s35, 1
        %s659 = scalar_select %p658, %s35, 1
        %s660 = scalar_lea.vmem %s11, %s659
        %p661 = pneg %p349
        %p662 = pneg %p346
        %p663 = scmp.lt.s32.totalorder %s35, 1
        %s664 = scalar_select %p663, %s35, 1
        %s665 = scalar_lea.vmem %s12, %s664
        %p666 = pneg %p375
        %p667 = pneg %p372
        %p668 = scmp.lt.s32.totalorder %s35, 1
        %s669 = scalar_select %p668, %s35, 1
        %s670 = scalar_lea.vmem %s13, %s669
        %p671 = pneg %p401
        %p672 = pneg %p398
        %p673 = pneg %p422
        %p674 = pneg %p419
        %p675 = pneg %p443
        %p676 = pneg %p440
        %p677 = pneg %p469
        %p678 = pneg %p466
        %s679 = sand.u32 %s456, 1
        %s680 = scalar_lea.sflag [#allocation4], %s679
        %s681 = sand.u32 %s456, 1
        %s682 = smul.addr %s681, 8
        %s683 = scalar_lea.vmem [#allocation3], %s682
        %p684 = scmp.lt.s32.totalorder %s34, 1
        %s685 = scalar_select %p684, %s34, 1
        %s686 = smul.addr %s685, 8
        %s687 = scalar_lea.vmem %s0, %s686
        %p688 = scmp.lt.s32.totalorder %s34, 1
        %s689 = scalar_select %p688, %s34, 1
        %s690 = scalar_lea.vmem %s1, %s689
        %p691 = scmp.lt.s32.totalorder %s35, 1
        %s692 = scalar_select %p691, %s35, 1
        %s693 = smul.addr %s692, 4
        %s694 = smul.addr %s693, 4
        %s695 = scalar_lea.vmem %s2, %s694
        %p696 = scmp.lt.s32.totalorder %s35, 1
        %s697 = scalar_select %p696, %s35, 1
        %s698 = scalar_lea.vmem %s3, %s697
        %p699 = scmp.lt.s32.totalorder %s35, 1
        %s700 = scalar_select %p699, %s35, 1
        %s701 = smul.addr %s700, 4
        %s702 = smul.addr %s701, 4
        %s703 = scalar_lea.vmem %s4, %s702
        %p704 = scmp.lt.s32.totalorder %s35, 1
        %s705 = scalar_select %p704, %s35, 1
        %s706 = scalar_lea.vmem %s5, %s705
        %p707 = scmp.lt.s32.totalorder %s35, 1
        %s708 = scalar_select %p707, %s35, 1
        %s709 = scalar_lea.vmem %s6, %s708
        %p710 = scmp.lt.s32.totalorder %s35, 1
        %s711 = scalar_select %p710, %s35, 1
        %s712 = scalar_lea.vmem %s7, %s711
        %p713 = scmp.lt.s32.totalorder %s35, 1
        %s714 = scalar_select %p713, %s35, 1
        %s715 = smul.addr %s714, 4
        %s716 = smul.addr %s715, 4
        %s717 = scalar_lea.vmem %s8, %s716
        %p718 = scmp.lt.s32.totalorder %s35, 1
        %s719 = scalar_select %p718, %s35, 1
        %s720 = scalar_lea.vmem %s9, %s719
        %p721 = scmp.lt.s32.totalorder %s35, 1
        %s722 = scalar_select %p721, %s35, 1
        %s723 = smul.addr %s722, 8
        %s724 = smul.addr %s723, 4
        %s725 = scalar_lea.vmem %s10, %s724
        %p726 = scmp.lt.s32.totalorder %s35, 1
        %s727 = scalar_select %p726, %s35, 1
        %s728 = scalar_lea.vmem %s11, %s727
        %p729 = scmp.lt.s32.totalorder %s35, 1
        %s730 = scalar_select %p729, %s35, 1
        %s731 = scalar_lea.vmem %s12, %s730
        %p732 = scmp.lt.s32.totalorder %s35, 1
        %s733 = scalar_select %p732, %s35, 1
        %s734 = scalar_lea.vmem %s13, %s733
        %p736 = scmp.eq.s32.totalorder %s35, 0
        // Predicated region
        $region85: #{encoder_forward.1} parent=83 // pred_check
          %p737 = pneg %p736
        $region86: #{encoder_forward.1} parent=83 // pred_check_branch
          %739 = sbr.rel (%p737) target = $region88
        $region87: #{encoder_forward.1} parent=83 // pred_region
          %v740 = vld [vmem:[%s687] sm:$0xff]
          %vm741 = vcmask 261120
          %742 = vst.msk [vmem:[#allocation2] sm:$0xff] %vm741, %v740
        $region88: #{encoder_forward.1} parent=83 // pred_fallthru
          _
        %v743 = vld [vmem:[#allocation2] sm:$0xff]
        %v744 = vld [vmem:[%s690] sm:$0x1]
        %v745 = vpack.c.bf16 %v743, %v743
        %v746 = vld [vmem:[%s695] sm:$0xf]
        %v747 = vld [vmem:[%s695 + $0x4] sm:$0xf]
        %v748 = vld [vmem:[%s695 + $0x8] sm:$0xf]
        %v749 = vld [vmem:[%s695 + $0xc] sm:$0xf]
        %v750 = vld [vmem:[%s698] sm:$0x1]
        %v752 = vlaneseq
        %v753 = vshrl.u32 %v752, 7
        %v754 = vsub.s32 0, %v753
        %v755 = vrot.slane %v750, %v754
        %v761 = vunpack.c.l.b16 %v746
        %v762 = vunpack.c.l.b16 %v747
        %v763 = vunpack.c.l.b16 %v748
        %v764 = vunpack.c.l.b16 %v749
        %v765 = vpack.c.b16 %v762, %v761
        %v766 = vpack.c.b16 %v764, %v763
        %vm769 = vcmask 261120
        %v771 = vsel %vm769, %v745, 0
        %773 = vmatprep.subr.bf16.mxu0 0
        %774 = vmatpush1.bf16.msra.mxu0 %v765
        %775 = vmatprep.subr.bf16.mxu0 0
        %776 = vmatpush1.bf16.msra.mxu0 %v766
        %777 = vmatprep.subr.bf16.mxu0 0
        %778 = vmatpush1.bf16.msra.mxu0 0
        %779 = vmatprep.subr.bf16.mxu0 0
        %780 = vmatpush1.bf16.msra.mxu0 0
        %781 = vmatprep.subr.bf16.mxu0 0
        %782 = vmatpush1.bf16.msra.mxu0 0
        %783 = vmatprep.subr.bf16.mxu0 0
        %784 = vmatpush1.bf16.msra.mxu0 0
        %785 = vmatprep.subr.bf16.mxu0 0
        %786 = vmatpush1.bf16.msra.mxu0 0
        %787 = vmatprep.subr.bf16.mxu0 0
        %788 = vmatpush1.bf16.msra.mxu0 0
        %789 = vmatprep.subr.bf16.mxu0 0
        %790 = vmatpush1.bf16.msra.mxu0 0
        %791 = vmatprep.subr.bf16.mxu0 0
        %792 = vmatpush1.bf16.msra.mxu0 0
        %793 = vmatprep.subr.bf16.mxu0 0
        %794 = vmatpush1.bf16.msra.mxu0 0
        %795 = vmatprep.subr.bf16.mxu0 0
        %796 = vmatpush1.bf16.msra.mxu0 0
        %797 = vmatprep.subr.bf16.mxu0 0
        %798 = vmatpush1.bf16.msra.mxu0 0
        %799 = vmatprep.subr.bf16.mxu0 0
        %800 = vmatpush1.bf16.msra.mxu0 0
        %801 = vmatprep.subr.bf16.mxu0 0
        %802 = vmatpush1.bf16.msra.mxu0 0
        %803 = vmatprep.subr.bf16.mxu0 0
        %804 = vmatpush1.bf16.msra.mxu0 0
        %805 = vmatprep.mubr.bf16.mxu0 0
        %806 = vmatmul.mubr.bf16.gmra.mrb[0].mxu0 %v771
        %v807 = vpop.f32.mrb[0].mxu0
        %v808 = vadd.f32 %v755, %v807
        %v809 = vpop.f32.mrb[0].mxu0
        %v810 = vpop.f32.mrb[0].mxu0
        %v811 = vpop.f32.mrb[0].mxu0
        %812 = vdwg.mxu0
        %v813 = vld [vmem:[%s703] sm:$0xf]
        %v814 = vld [vmem:[%s703 + $0x4] sm:$0xf]
        %v815 = vld [vmem:[%s703 + $0x8] sm:$0xf]
        %v816 = vld [vmem:[%s703 + $0xc] sm:$0xf]
        %v817 = vld [vmem:[%s706] sm:$0x1]
        %v819 = vlaneseq
        %v820 = vshrl.u32 %v819, 7
        %v821 = vsub.s32 0, %v820
        %v822 = vrot.slane %v817, %v821
        %v824 = vadd.f32 %v743, %v822
        %v825 = vpack.c.bf16 %v808, %v808
        %827 = vrot.lane.b32.xlu0 %v825, 96
        %v828 = vpop.permute.xlu0 %827
        %vm829 = vcmask 64512
        %v831 = vsel %vm829, %v825, 0
        %v834 = vsel %vm829, %v828, 0
        %836 = vmatprep.subr.bf16.mxu0 0
        %837 = vmatpush1.bf16.xpose.msra.mxu0 %v834
        %838 = vmatprep.subr.bf16.mxu0 0
        %839 = vmatpush1.bf16.xpose.msra.mxu0 0
        %840 = vmatprep.subr.bf16.mxu0 0
        %841 = vmatpush1.bf16.xpose.msra.mxu0 0
        %842 = vmatprep.subr.bf16.mxu0 0
        %843 = vmatpush1.bf16.xpose.msra.mxu0 0
        %844 = vmatprep.subr.bf16.mxu0 0
        %845 = vmatpush1.bf16.xpose.msra.mxu0 0
        %846 = vmatprep.subr.bf16.mxu0 0
        %847 = vmatpush1.bf16.xpose.msra.mxu0 0
        %848 = vmatprep.subr.bf16.mxu0 0
        %849 = vmatpush1.bf16.xpose.msra.mxu0 0
        %850 = vmatprep.subr.bf16.mxu0 0
        %851 = vmatpush1.bf16.xpose.msra.mxu0 0
        %852 = vmatprep.subr.bf16.mxu0 0
        %853 = vmatpush1.bf16.xpose.msra.mxu0 0
        %854 = vmatprep.subr.bf16.mxu0 0
        %855 = vmatpush1.bf16.xpose.msra.mxu0 0
        %856 = vmatprep.subr.bf16.mxu0 0
        %857 = vmatpush1.bf16.xpose.msra.mxu0 0
        %858 = vmatprep.subr.bf16.mxu0 0
        %859 = vmatpush1.bf16.xpose.msra.mxu0 0
        %860 = vmatprep.subr.bf16.mxu0 0
        %861 = vmatpush1.bf16.xpose.msra.mxu0 0
        %862 = vmatprep.subr.bf16.mxu0 0
        %863 = vmatpush1.bf16.xpose.msra.mxu0 0
        %864 = vmatprep.subr.bf16.mxu0 0
        %865 = vmatpush1.bf16.xpose.msra.mxu0 0
        %866 = vmatprep.subr.bf16.mxu0 0
        %867 = vmatpush1.bf16.xpose.msra.mxu0 0
        %868 = vmatprep.mubr.bf16.mxu0 0
        %869 = vmatmul.mubr.bf16.gmra.mrb[0].mxu0 %v831
        %v870 = vpop.f32.mrb[0].mxu0
        %v871 = vadd.f32 0.0, %v870
        %v872 = vpop.f32.mrb[0].mxu0
        %v873 = vpop.f32.mrb[0].mxu0
        %v874 = vpop.f32.mrb[0].mxu0
        %875 = vdwg.mxu0
        %v876 = vmul.f32 %v871, 0.35355338
        %v878 = vlaneseq
        %v879 = vshrl.u32 %v878, 7
        %v880 = vsub.s32 0, %v879
        %v881 = vrot.slane %v744, %v880
        %v883 = vadd.f32 %v876, %v881
        %v884 = vsel %vm829, %v883, -inf
        %885 = vmax.xlane.f32.xlu0 %v884
        %v886 = vpop.xlane.xlu0 %885
        %v887 = vsub.f32 %v883, %v886
        %v888 = vmul.f32 %v887, 1.442695
        %v889 = vpow.pop %v888
        %v890 = vsel %vm829, %v889, 0.0
        %891 = vadd.xlane.f32.xlu0 %v890
        %v892 = vpop.xlane.xlu0 %891
        %v893 = vrcp.pop %v892
        %v894 = vmul.f32 %v889, %v893
        %v895 = vpack.c.bf16 %v894, %v894
        %896 = vrot.lane.b32.xlu0 %v825, 64
        %v897 = vpop.permute.xlu0 %896
        %v899 = vsel %vm829, %v895, 0
        %vm901 = vcmask 1043456
        %v903 = vsel %vm901, %v897, 0
        %905 = vmatprep.subr.bf16.mxu0 0
        %906 = vmatpush1.bf16.msra.mxu0 %v903
        %907 = vmatprep.subr.bf16.mxu0 0
        %908 = vmatpush1.bf16.msra.mxu0 0
        %909 = vmatprep.subr.bf16.mxu0 0
        %910 = vmatpush1.bf16.msra.mxu0 0
        %911 = vmatprep.subr.bf16.mxu0 0
        %912 = vmatpush1.bf16.msra.mxu0 0
        %913 = vmatprep.subr.bf16.mxu0 0
        %914 = vmatpush1.bf16.msra.mxu0 0
        %915 = vmatprep.subr.bf16.mxu0 0
        %916 = vmatpush1.bf16.msra.mxu0 0
        %917 = vmatprep.subr.bf16.mxu0 0
        %918 = vmatpush1.bf16.msra.mxu0 0
        %919 = vmatprep.subr.bf16.mxu0 0
        %920 = vmatpush1.bf16.msra.mxu0 0
        %921 = vmatprep.subr.bf16.mxu0 0
        %922 = vmatpush1.bf16.msra.mxu0 0
        %923 = vmatprep.subr.bf16.mxu0 0
        %924 = vmatpush1.bf16.msra.mxu0 0
        %925 = vmatprep.subr.bf16.mxu0 0
        %926 = vmatpush1.bf16.msra.mxu0 0
        %927 = vmatprep.subr.bf16.mxu0 0
        %928 = vmatpush1.bf16.msra.mxu0 0
        %929 = vmatprep.subr.bf16.mxu0 0
        %930 = vmatpush1.bf16.msra.mxu0 0
        %931 = vmatprep.subr.bf16.mxu0 0
        %932 = vmatpush1.bf16.msra.mxu0 0
        %933 = vmatprep.subr.bf16.mxu0 0
        %934 = vmatpush1.bf16.msra.mxu0 0
        %935 = vmatprep.subr.bf16.mxu0 0
        %936 = vmatpush1.bf16.msra.mxu0 0
        %937 = vmatprep.mubr.bf16.mxu0 0
        %938 = vmatmul.mubr.bf16.gmra.mrb[0].mxu0 %v899
        %v939 = vpop.f32.mrb[0].mxu0
        %v940 = vadd.f32 0.0, %v939
        %v941 = vpop.f32.mrb[0].mxu0
        %v942 = vpop.f32.mrb[0].mxu0
        %v943 = vpop.f32.mrb[0].mxu0
        %944 = vdwg.mxu0
        %v945 = vpack.c.bf16 %v940, %v940
        %v947 = vsel %vm829, %v945, 0
        %v950 = vsel %vm901, %v813, 0
        %952 = vmatprep.subr.bf16.mxu0 0
        %953 = vmatpush1.bf16.msra.mxu0 %v950
        %954 = vmatprep.subr.bf16.mxu0 0
        %955 = vmatpush1.bf16.msra.mxu0 0
        %956 = vmatprep.subr.bf16.mxu0 0
        %957 = vmatpush1.bf16.msra.mxu0 0
        %958 = vmatprep.subr.bf16.mxu0 0
        %959 = vmatpush1.bf16.msra.mxu0 0
        %960 = vmatprep.subr.bf16.mxu0 0
        %961 = vmatpush1.bf16.msra.mxu0 0
        %962 = vmatprep.subr.bf16.mxu0 0
        %963 = vmatpush1.bf16.msra.mxu0 0
        %964 = vmatprep.subr.bf16.mxu0 0
        %965 = vmatpush1.bf16.msra.mxu0 0
        %966 = vmatprep.subr.bf16.mxu0 0
        %967 = vmatpush1.bf16.msra.mxu0 0
        %968 = vmatprep.subr.bf16.mxu0 0
        %969 = vmatpush1.bf16.msra.mxu0 0
        %970 = vmatprep.subr.bf16.mxu0 0
        %971 = vmatpush1.bf16.msra.mxu0 0
        %972 = vmatprep.subr.bf16.mxu0 0
        %973 = vmatpush1.bf16.msra.mxu0 0
        %974 = vmatprep.subr.bf16.mxu0 0
        %975 = vmatpush1.bf16.msra.mxu0 0
        %976 = vmatprep.subr.bf16.mxu0 0
        %977 = vmatpush1.bf16.msra.mxu0 0
        %978 = vmatprep.subr.bf16.mxu0 0
        %979 = vmatpush1.bf16.msra.mxu0 0
        %980 = vmatprep.subr.bf16.mxu0 0
        %981 = vmatpush1.bf16.msra.mxu0 0
        %982 = vmatprep.subr.bf16.mxu0 0
        %983 = vmatpush1.bf16.msra.mxu0 0
        %984 = vmatprep.mubr.bf16.mxu0 0
        %985 = vmatmul.mubr.bf16.gmra.mrb[0].mxu0 %v947
        %v986 = vpop.f32.mrb[0].mxu0
        %v987 = vadd.f32 0.0, %v986
        %v988 = vpop.f32.mrb[0].mxu0
        %v989 = vpop.f32.mrb[0].mxu0
        %v990 = vpop.f32.mrb[0].mxu0
        %991 = vdwg.mxu0
        %v992 = vadd.f32 %v824, %v987
        %993 = vrot.lane.b32.xlu0 %v825, 120
        %v994 = vpop.permute.xlu0 %993
        %995 = vrot.lane.b32.xlu0 %v825, 88
        %v996 = vpop.permute.xlu0 %995
        %v998 = vsel %vm829, %v994, 0
        %v1001 = vsel %vm829, %v996, 0
        %1003 = vmatprep.subr.bf16.mxu0 0
        %1004 = vmatpush1.bf16.xpose.msra.mxu0 %v1001
        %1005 = vmatprep.subr.bf16.mxu0 0
        %1006 = vmatpush1.bf16.xpose.msra.mxu0 0
        %1007 = vmatprep.subr.bf16.mxu0 0
        %1008 = vmatpush1.bf16.xpose.msra.mxu0 0
        %1009 = vmatprep.subr.bf16.mxu0 0
        %1010 = vmatpush1.bf16.xpose.msra.mxu0 0
        %1011 = vmatprep.subr.bf16.mxu0 0
        %1012 = vmatpush1.bf16.xpose.msra.mxu0 0
        %1013 = vmatprep.subr.bf16.mxu0 0
        %1014 = vmatpush1.bf16.xpose.msra.mxu0 0
        %1015 = vmatprep.subr.bf16.mxu0 0
        %1016 = vmatpush1.bf16.xpose.msra.mxu0 0
        %1017 = vmatprep.subr.bf16.mxu0 0
        %1018 = vmatpush1.bf16.xpose.msra.mxu0 0
        %1019 = vmatprep.subr.bf16.mxu0 0
        %1020 = vmatpush1.bf16.xpose.msra.mxu0 0
        %1021 = vmatprep.subr.bf16.mxu0 0
        %1022 = vmatpush1.bf16.xpose.msra.mxu0 0
        %1023 = vmatprep.subr.bf16.mxu0 0
        %1024 = vmatpush1.bf16.xpose.msra.mxu0 0
        %1025 = vmatprep.subr.bf16.mxu0 0
        %1026 = vmatpush1.bf16.xpose.msra.mxu0 0
        %1027 = vmatprep.subr.bf16.mxu0 0
        %1028 = vmatpush1.bf16.xpose.msra.mxu0 0
        %1029 = vmatprep.subr.bf16.mxu0 0
        %1030 = vmatpush1.bf16.xpose.msra.mxu0 0
        %1031 = vmatprep.subr.bf16.mxu0 0
        %1032 = vmatpush1.bf16.xpose.msra.mxu0 0
        %1033 = vmatprep.subr.bf16.mxu0 0
        %1034 = vmatpush1.bf16.xpose.msra.mxu0 0
        %1035 = vmatprep.mubr.bf16.mxu0 0
        %1036 = vmatmul.mubr.bf16.gmra.mrb[0].mxu0 %v998
        %v1037 = vpop.f32.mrb[0].mxu0
        %v1038 = vadd.f32 0.0, %v1037
        %v1039 = vpop.f32.mrb[0].mxu0
        %v1040 = vpop.f32.mrb[0].mxu0
        %v1041 = vpop.f32.mrb[0].mxu0
        %1042 = vdwg.mxu0
        %v1043 = vmul.f32 %v1038, 0.35355338
        %v1044 = vadd.f32 %v1043, %v881
        %v1045 = vsel %vm829, %v1044, -inf
        %1046 = vmax.xlane.f32.xlu0 %v1045
        %v1047 = vpop.xlane.xlu0 %1046
        %v1048 = vsub.f32 %v1044, %v1047
        %v1049 = vmul.f32 %v1048, 1.442695
        %v1050 = vpow.pop %v1049
        %v1051 = vsel %vm829, %v1050, 0.0
        %1052 = vadd.xlane.f32.xlu0 %v1051
        %v1053 = vpop.xlane.xlu0 %1052
        %v1054 = vrcp.pop %v1053
        %v1055 = vmul.f32 %v1050, %v1054
        %v1056 = vpack.c.bf16 %v1055, %v1055
        %1057 = vrot.lane.b32.xlu0 %v825, 56
        %v1058 = vpop.permute.xlu0 %1057
        %v1060 = vsel %vm829, %v1056, 0
        %v1063 = vsel %vm901, %v1058, 0
        %1065 = vmatprep.subr.bf16.mxu0 0
        %1066 = vmatpush1.bf16.msra.mxu0 %v1063
        %1067 = vmatprep.subr.bf16.mxu0 0
        %1068 = vmatpush1.bf16.msra.mxu0 0
        %1069 = vmatprep.subr.bf16.mxu0 0
        %1070 = vmatpush1.bf16.msra.mxu0 0
        %1071 = vmatprep.subr.bf16.mxu0 0
        %1072 = vmatpush1.bf16.msra.mxu0 0
        %1073 = vmatprep.subr.bf16.mxu0 0
        %1074 = vmatpush1.bf16.msra.mxu0 0
        %1075 = vmatprep.subr.bf16.mxu0 0
        %1076 = vmatpush1.bf16.msra.mxu0 0
        %1077 = vmatprep.subr.bf16.mxu0 0
        %1078 = vmatpush1.bf16.msra.mxu0 0
        %1079 = vmatprep.subr.bf16.mxu0 0
        %1080 = vmatpush1.bf16.msra.mxu0 0
        %1081 = vmatprep.subr.bf16.mxu0 0
        %1082 = vmatpush1.bf16.msra.mxu0 0
        %1083 = vmatprep.subr.bf16.mxu0 0
        %1084 = vmatpush1.bf16.msra.mxu0 0
        %1085 = vmatprep.subr.bf16.mxu0 0
        %1086 = vmatpush1.bf16.msra.mxu0 0
        %1087 = vmatprep.subr.bf16.mxu0 0
        %1088 = vmatpush1.bf16.msra.mxu0 0
        %1089 = vmatprep.subr.bf16.mxu0 0
        %1090 = vmatpush1.bf16.msra.mxu0 0
        %1091 = vmatprep.subr.bf16.mxu0 0
        %1092 = vmatpush1.bf16.msra.mxu0 0
        %1093 = vmatprep.subr.bf16.mxu0 0
        %1094 = vmatpush1.bf16.msra.mxu0 0
        %1095 = vmatprep.subr.bf16.mxu0 0
        %1096 = vmatpush1.bf16.msra.mxu0 0
        %1097 = vmatprep.mubr.bf16.mxu0 0
        %1098 = vmatmul.mubr.bf16.gmra.mrb[0].mxu0 %v1060
        %v1099 = vpop.f32.mrb[0].mxu0
        %v1100 = vadd.f32 0.0, %v1099
        %v1101 = vpop.f32.mrb[0].mxu0
        %v1102 = vpop.f32.mrb[0].mxu0
        %v1103 = vpop.f32.mrb[0].mxu0
        %1104 = vdwg.mxu0
        %v1105 = vpack.c.bf16 %v1100, %v1100
        %v1107 = vsel %vm829, %v1105, 0
        %v1110 = vsel %vm901, %v814, 0
        %1112 = vmatprep.subr.bf16.mxu0 0
        %1113 = vmatpush1.bf16.msra.mxu0 %v1110
        %1114 = vmatprep.subr.bf16.mxu0 0
        %1115 = vmatpush1.bf16.msra.mxu0 0
        %1116 = vmatprep.subr.bf16.mxu0 0
        %1117 = vmatpush1.bf16.msra.mxu0 0
        %1118 = vmatprep.subr.bf16.mxu0 0
        %1119 = vmatpush1.bf16.msra.mxu0 0
        %1120 = vmatprep.subr.bf16.mxu0 0
        %1121 = vmatpush1.bf16.msra.mxu0 0
        %1122 = vmatprep.subr.bf16.mxu0 0
        %1123 = vmatpush1.bf16.msra.mxu0 0
        %1124 = vmatprep.subr.bf16.mxu0 0
        %1125 = vmatpush1.bf16.msra.mxu0 0
        %1126 = vmatprep.subr.bf16.mxu0 0
        %1127 = vmatpush1.bf16.msra.mxu0 0
        %1128 = vmatprep.subr.bf16.mxu0 0
        %1129 = vmatpush1.bf16.msra.mxu0 0
        %1130 = vmatprep.subr.bf16.mxu0 0
        %1131 = vmatpush1.bf16.msra.mxu0 0
        %1132 = vmatprep.subr.bf16.mxu0 0
        %1133 = vmatpush1.bf16.msra.mxu0 0
        %1134 = vmatprep.subr.bf16.mxu0 0
        %1135 = vmatpush1.bf16.msra.mxu0 0
        %1136 = vmatprep.subr.bf16.mxu0 0
        %1137 = vmatpush1.bf16.msra.mxu0 0
        %1138 = vmatprep.subr.bf16.mxu0 0
        %1139 = vmatpush1.bf16.msra.mxu0 0
        %1140 = vmatprep.subr.bf16.mxu0 0
        %1141 = vmatpush1.bf16.msra.mxu0 0
        %1142 = vmatprep.subr.bf16.mxu0 0
        %1143 = vmatpush1.bf16.msra.mxu0 0
        %1144 = vmatprep.mubr.bf16.mxu0 0
        %1145 = vmatmul.mubr.bf16.gmra.mrb[0].mxu0 %v1107
        %v1146 = vpop.f32.mrb[0].mxu0
        %v1147 = vadd.f32 0.0, %v1146
        %v1148 = vpop.f32.mrb[0].mxu0
        %v1149 = vpop.f32.mrb[0].mxu0
        %v1150 = vpop.f32.mrb[0].mxu0
        %1151 = vdwg.mxu0
        %v1152 = vadd.f32 %v992, %v1147
        %1153 = vrot.lane.b32.xlu0 %v825, 112
        %v1154 = vpop.permute.xlu0 %1153
        %1155 = vrot.lane.b32.xlu0 %v825, 80
        %v1156 = vpop.permute.xlu0 %1155
        %v1158 = vsel %vm829, %v1154, 0
        %v1161 = vsel %vm829, %v1156, 0
        %1163 = vmatprep.subr.bf16.mxu0 0
        %1164 = vmatpush1.bf16.xpose.msra.mxu0 %v1161
        %1165 = vmatprep.subr.bf16.mxu0 0
        %1166 = vmatpush1.bf16.xpose.msra.mxu0 0
        %1167 = vmatprep.subr.bf16.mxu0 0
        %1168 = vmatpush1.bf16.xpose.msra.mxu0 0
        %1169 = vmatprep.subr.bf16.mxu0 0
        %1170 = vmatpush1.bf16.xpose.msra.mxu0 0
        %1171 = vmatprep.subr.bf16.mxu0 0
        %1172 = vmatpush1.bf16.xpose.msra.mxu0 0
        %1173 = vmatprep.subr.bf16.mxu0 0
        %1174 = vmatpush1.bf16.xpose.msra.mxu0 0
        %1175 = vmatprep.subr.bf16.mxu0 0
        %1176 = vmatpush1.bf16.xpose.msra.mxu0 0
        %1177 = vmatprep.subr.bf16.mxu0 0
        %1178 = vmatpush1.bf16.xpose.msra.mxu0 0
        %1179 = vmatprep.subr.bf16.mxu0 0
        %1180 = vmatpush1.bf16.xpose.msra.mxu0 0
        %1181 = vmatprep.subr.bf16.mxu0 0
        %1182 = vmatpush1.bf16.xpose.msra.mxu0 0
        %1183 = vmatprep.subr.bf16.mxu0 0
        %1184 = vmatpush1.bf16.xpose.msra.mxu0 0
        %1185 = vmatprep.subr.bf16.mxu0 0
        %1186 = vmatpush1.bf16.xpose.msra.mxu0 0
        %1187 = vmatprep.subr.bf16.mxu0 0
        %1188 = vmatpush1.bf16.xpose.msra.mxu0 0
        %1189 = vmatprep.subr.bf16.mxu0 0
        %1190 = vmatpush1.bf16.xpose.msra.mxu0 0
        %1191 = vmatprep.subr.bf16.mxu0 0
        %1192 = vmatpush1.bf16.xpose.msra.mxu0 0
        %1193 = vmatprep.subr.bf16.mxu0 0
        %1194 = vmatpush1.bf16.xpose.msra.mxu0 0
        %1195 = vmatprep.mubr.bf16.mxu0 0
        %1196 = vmatmul.mubr.bf16.gmra.mrb[0].mxu0 %v1158
        %v1197 = vpop.f32.mrb[0].mxu0
        %v1198 = vadd.f32 0.0, %v1197
        %v1199 = vpop.f32.mrb[0].mxu0
        %v1200 = vpop.f32.mrb[0].mxu0
        %v1201 = vpop.f32.mrb[0].mxu0
        %1202 = vdwg.mxu0
        %v1203 = vmul.f32 %v1198, 0.35355338
        %v1204 = vadd.f32 %v1203, %v881
        %v1205 = vsel %vm829, %v1204, -inf
        %1206 = vmax.xlane.f32.xlu0 %v1205
        %v1207 = vpop.xlane.xlu0 %1206
        %v1208 = vsub.f32 %v1204, %v1207
        %v1209 = vmul.f32 %v1208, 1.442695
        %v1210 = vpow.pop %v1209
        %v1211 = vsel %vm829, %v1210, 0.0
        %1212 = vadd.xlane.f32.xlu0 %v1211
        %v1213 = vpop.xlane.xlu0 %1212
        %v1214 = vrcp.pop %v1213
        %v1215 = vmul.f32 %v1210, %v1214
        %v1216 = vpack.c.bf16 %v1215, %v1215
        %1217 = vrot.lane.b32.xlu0 %v825, 48
        %v1218 = vpop.permute.xlu0 %1217
        %v1220 = vsel %vm829, %v1216, 0
        %v1223 = vsel %vm901, %v1218, 0
        %1225 = vmatprep.subr.bf16.mxu0 0
        %1226 = vmatpush1.bf16.msra.mxu0 %v1223
        %1227 = vmatprep.subr.bf16.mxu0 0
        %1228 = vmatpush1.bf16.msra.mxu0 0
        %1229 = vmatprep.subr.bf16.mxu0 0
        %1230 = vmatpush1.bf16.msra.mxu0 0
        %1231 = vmatprep.subr.bf16.mxu0 0
        %1232 = vmatpush1.bf16.msra.mxu0 0
        %1233 = vmatprep.subr.bf16.mxu0 0
        %1234 = vmatpush1.bf16.msra.mxu0 0
        %1235 = vmatprep.subr.bf16.mxu0 0
        %1236 = vmatpush1.bf16.msra.mxu0 0
        %1237 = vmatprep.subr.bf16.mxu0 0
        %1238 = vmatpush1.bf16.msra.mxu0 0
        %1239 = vmatprep.subr.bf16.mxu0 0
        %1240 = vmatpush1.bf16.msra.mxu0 0
        %1241 = vmatprep.subr.bf16.mxu0 0
        %1242 = vmatpush1.bf16.msra.mxu0 0
        %1243 = vmatprep.subr.bf16.mxu0 0
        %1244 = vmatpush1.bf16.msra.mxu0 0
        %1245 = vmatprep.subr.bf16.mxu0 0
        %1246 = vmatpush1.bf16.msra.mxu0 0
        %1247 = vmatprep.subr.bf16.mxu0 0
        %1248 = vmatpush1.bf16.msra.mxu0 0
        %1249 = vmatprep.subr.bf16.mxu0 0
        %1250 = vmatpush1.bf16.msra.mxu0 0
        %1251 = vmatprep.subr.bf16.mxu0 0
        %1252 = vmatpush1.bf16.msra.mxu0 0
        %1253 = vmatprep.subr.bf16.mxu0 0
        %1254 = vmatpush1.bf16.msra.mxu0 0
        %1255 = vmatprep.subr.bf16.mxu0 0
        %1256 = vmatpush1.bf16.msra.mxu0 0
        %1257 = vmatprep.mubr.bf16.mxu0 0
        %1258 = vmatmul.mubr.bf16.gmra.mrb[0].mxu0 %v1220
        %v1259 = vpop.f32.mrb[0].mxu0
        %v1260 = vadd.f32 0.0, %v1259
        %v1261 = vpop.f32.mrb[0].mxu0
        %v1262 = vpop.f32.mrb[0].mxu0
        %v1263 = vpop.f32.mrb[0].mxu0
        %1264 = vdwg.mxu0
        %v1265 = vpack.c.bf16 %v1260, %v1260
        %v1267 = vsel %vm829, %v1265, 0
        %v1270 = vsel %vm901, %v815, 0
        %1272 = vmatprep.subr.bf16.mxu0 0
        %1273 = vmatpush1.bf16.msra.mxu0 %v1270
        %1274 = vmatprep.subr.bf16.mxu0 0
        %1275 = vmatpush1.bf16.msra.mxu0 0
        %1276 = vmatprep.subr.bf16.mxu0 0
        %1277 = vmatpush1.bf16.msra.mxu0 0
        %1278 = vmatprep.subr.bf16.mxu0 0
        %1279 = vmatpush1.bf16.msra.mxu0 0
        %1280 = vmatprep.subr.bf16.mxu0 0
        %1281 = vmatpush1.bf16.msra.mxu0 0
        %1282 = vmatprep.subr.bf16.mxu0 0
        %1283 = vmatpush1.bf16.msra.mxu0 0
        %1284 = vmatprep.subr.bf16.mxu0 0
        %1285 = vmatpush1.bf16.msra.mxu0 0
        %1286 = vmatprep.subr.bf16.mxu0 0
        %1287 = vmatpush1.bf16.msra.mxu0 0
        %1288 = vmatprep.subr.bf16.mxu0 0
        %1289 = vmatpush1.bf16.msra.mxu0 0
        %1290 = vmatprep.subr.bf16.mxu0 0
        %1291 = vmatpush1.bf16.msra.mxu0 0
        %1292 = vmatprep.subr.bf16.mxu0 0
        %1293 = vmatpush1.bf16.msra.mxu0 0
        %1294 = vmatprep.subr.bf16.mxu0 0
        %1295 = vmatpush1.bf16.msra.mxu0 0
        %1296 = vmatprep.subr.bf16.mxu0 0
        %1297 = vmatpush1.bf16.msra.mxu0 0
        %1298 = vmatprep.subr.bf16.mxu0 0
        %1299 = vmatpush1.bf16.msra.mxu0 0
        %1300 = vmatprep.subr.bf16.mxu0 0
        %1301 = vmatpush1.bf16.msra.mxu0 0
        %1302 = vmatprep.subr.bf16.mxu0 0
        %1303 = vmatpush1.bf16.msra.mxu0 0
        %1304 = vmatprep.mubr.bf16.mxu0 0
        %1305 = vmatmul.mubr.bf16.gmra.mrb[0].mxu0 %v1267
        %v1306 = vpop.f32.mrb[0].mxu0
        %v1307 = vadd.f32 0.0, %v1306
        %v1308 = vpop.f32.mrb[0].mxu0
        %v1309 = vpop.f32.mrb[0].mxu0
        %v1310 = vpop.f32.mrb[0].mxu0
        %1311 = vdwg.mxu0
        %v1312 = vadd.f32 %v1152, %v1307
        %1313 = vrot.lane.b32.xlu0 %v825, 104
        %v1314 = vpop.permute.xlu0 %1313
        %1315 = vrot.lane.b32.xlu0 %v825, 72
        %v1316 = vpop.permute.xlu0 %1315
        %v1318 = vsel %vm829, %v1314, 0
        %v1321 = vsel %vm829, %v1316, 0
        %1323 = vmatprep.subr.bf16.mxu0 0
        %1324 = vmatpush1.bf16.xpose.msra.mxu0 %v1321
        %1325 = vmatprep.subr.bf16.mxu0 0
        %1326 = vmatpush1.bf16.xpose.msra.mxu0 0
        %1327 = vmatprep.subr.bf16.mxu0 0
        %1328 = vmatpush1.bf16.xpose.msra.mxu0 0
        %1329 = vmatprep.subr.bf16.mxu0 0
        %1330 = vmatpush1.bf16.xpose.msra.mxu0 0
        %1331 = vmatprep.subr.bf16.mxu0 0
        %1332 = vmatpush1.bf16.xpose.msra.mxu0 0
        %1333 = vmatprep.subr.bf16.mxu0 0
        %1334 = vmatpush1.bf16.xpose.msra.mxu0 0
        %1335 = vmatprep.subr.bf16.mxu0 0
        %1336 = vmatpush1.bf16.xpose.msra.mxu0 0
        %1337 = vmatprep.subr.bf16.mxu0 0
        %1338 = vmatpush1.bf16.xpose.msra.mxu0 0
        %1339 = vmatprep.subr.bf16.mxu0 0
        %1340 = vmatpush1.bf16.xpose.msra.mxu0 0
        %1341 = vmatprep.subr.bf16.mxu0 0
        %1342 = vmatpush1.bf16.xpose.msra.mxu0 0
        %1343 = vmatprep.subr.bf16.mxu0 0
        %1344 = vmatpush1.bf16.xpose.msra.mxu0 0
        %1345 = vmatprep.subr.bf16.mxu0 0
        %1346 = vmatpush1.bf16.xpose.msra.mxu0 0
        %1347 = vmatprep.subr.bf16.mxu0 0
        %1348 = vmatpush1.bf16.xpose.msra.mxu0 0
        %1349 = vmatprep.subr.bf16.mxu0 0
        %1350 = vmatpush1.bf16.xpose.msra.mxu0 0
        %1351 = vmatprep.subr.bf16.mxu0 0
        %1352 = vmatpush1.bf16.xpose.msra.mxu0 0
        %1353 = vmatprep.subr.bf16.mxu0 0
        %1354 = vmatpush1.bf16.xpose.msra.mxu0 0
        %1355 = vmatprep.mubr.bf16.mxu0 0
        %1356 = vmatmul.mubr.bf16.gmra.mrb[0].mxu0 %v1318
        %v1357 = vpop.f32.mrb[0].mxu0
        %v1358 = vadd.f32 0.0, %v1357
        %v1359 = vpop.f32.mrb[0].mxu0
        %v1360 = vpop.f32.mrb[0].mxu0
        %v1361 = vpop.f32.mrb[0].mxu0
        %1362 = vdwg.mxu0
        %v1363 = vmul.f32 %v1358, 0.35355338
        %v1364 = vadd.f32 %v1363, %v881
        %v1365 = vsel %vm829, %v1364, -inf
        %1366 = vmax.xlane.f32.xlu0 %v1365
        %v1367 = vpop.xlane.xlu0 %1366
        %v1368 = vsub.f32 %v1364, %v1367
        %v1369 = vmul.f32 %v1368, 1.442695
        %v1370 = vpow.pop %v1369
        %v1371 = vsel %vm829, %v1370, 0.0
        %1372 = vadd.xlane.f32.xlu0 %v1371
        %v1373 = vpop.xlane.xlu0 %1372
        %v1374 = vrcp.pop %v1373
        %v1375 = vmul.f32 %v1370, %v1374
        %v1376 = vpack.c.bf16 %v1375, %v1375
        %1377 = vrot.lane.b32.xlu0 %v825, 40
        %v1378 = vpop.permute.xlu0 %1377
        %v1380 = vsel %vm829, %v1376, 0
        %v1383 = vsel %vm901, %v1378, 0
        %1385 = vmatprep.subr.bf16.mxu0 0
        %1386 = vmatpush1.bf16.msra.mxu0 %v1383
        %1387 = vmatprep.subr.bf16.mxu0 0
        %1388 = vmatpush1.bf16.msra.mxu0 0
        %1389 = vmatprep.subr.bf16.mxu0 0
        %1390 = vmatpush1.bf16.msra.mxu0 0
        %1391 = vmatprep.subr.bf16.mxu0 0
        %1392 = vmatpush1.bf16.msra.mxu0 0
        %1393 = vmatprep.subr.bf16.mxu0 0
        %1394 = vmatpush1.bf16.msra.mxu0 0
        %1395 = vmatprep.subr.bf16.mxu0 0
        %1396 = vmatpush1.bf16.msra.mxu0 0
        %1397 = vmatprep.subr.bf16.mxu0 0
        %1398 = vmatpush1.bf16.msra.mxu0 0
        %1399 = vmatprep.subr.bf16.mxu0 0
        %1400 = vmatpush1.bf16.msra.mxu0 0
        %1401 = vmatprep.subr.bf16.mxu0 0
        %1402 = vmatpush1.bf16.msra.mxu0 0
        %1403 = vmatprep.subr.bf16.mxu0 0
        %1404 = vmatpush1.bf16.msra.mxu0 0
        %1405 = vmatprep.subr.bf16.mxu0 0
        %1406 = vmatpush1.bf16.msra.mxu0 0
        %1407 = vmatprep.subr.bf16.mxu0 0
        %1408 = vmatpush1.bf16.msra.mxu0 0
        %1409 = vmatprep.subr.bf16.mxu0 0
        %1410 = vmatpush1.bf16.msra.mxu0 0
        %1411 = vmatprep.subr.bf16.mxu0 0
        %1412 = vmatpush1.bf16.msra.mxu0 0
        %1413 = vmatprep.subr.bf16.mxu0 0
        %1414 = vmatpush1.bf16.msra.mxu0 0
        %1415 = vmatprep.subr.bf16.mxu0 0
        %1416 = vmatpush1.bf16.msra.mxu0 0
        %1417 = vmatprep.mubr.bf16.mxu0 0
        %1418 = vmatmul.mubr.bf16.gmra.mrb[0].mxu0 %v1380
        %v1419 = vpop.f32.mrb[0].mxu0
        %v1420 = vadd.f32 0.0, %v1419
        %v1421 = vpop.f32.mrb[0].mxu0
        %v1422 = vpop.f32.mrb[0].mxu0
        %v1423 = vpop.f32.mrb[0].mxu0
        %1424 = vdwg.mxu0
        %v1425 = vpack.c.bf16 %v1420, %v1420
        %v1427 = vsel %vm829, %v1425, 0
        %v1430 = vsel %vm901, %v816, 0
        %1432 = vmatprep.subr.bf16.mxu0 0
        %1433 = vmatpush1.bf16.msra.mxu0 %v1430
        %1434 = vmatprep.subr.bf16.mxu0 0
        %1435 = vmatpush1.bf16.msra.mxu0 0
        %1436 = vmatprep.subr.bf16.mxu0 0
        %1437 = vmatpush1.bf16.msra.mxu0 0
        %1438 = vmatprep.subr.bf16.mxu0 0
        %1439 = vmatpush1.bf16.msra.mxu0 0
        %1440 = vmatprep.subr.bf16.mxu0 0
        %1441 = vmatpush1.bf16.msra.mxu0 0
        %1442 = vmatprep.subr.bf16.mxu0 0
        %1443 = vmatpush1.bf16.msra.mxu0 0
        %1444 = vmatprep.subr.bf16.mxu0 0
        %1445 = vmatpush1.bf16.msra.mxu0 0
        %1446 = vmatprep.subr.bf16.mxu0 0
        %1447 = vmatpush1.bf16.msra.mxu0 0
        %1448 = vmatprep.subr.bf16.mxu0 0
        %1449 = vmatpush1.bf16.msra.mxu0 0
        %1450 = vmatprep.subr.bf16.mxu0 0
        %1451 = vmatpush1.bf16.msra.mxu0 0
        %1452 = vmatprep.subr.bf16.mxu0 0
        %1453 = vmatpush1.bf16.msra.mxu0 0
        %1454 = vmatprep.subr.bf16.mxu0 0
        %1455 = vmatpush1.bf16.msra.mxu0 0
        %1456 = vmatprep.subr.bf16.mxu0 0
        %1457 = vmatpush1.bf16.msra.mxu0 0
        %1458 = vmatprep.subr.bf16.mxu0 0
        %1459 = vmatpush1.bf16.msra.mxu0 0
        %1460 = vmatprep.subr.bf16.mxu0 0
        %1461 = vmatpush1.bf16.msra.mxu0 0
        %1462 = vmatprep.subr.bf16.mxu0 0
        %1463 = vmatpush1.bf16.msra.mxu0 0
        %1464 = vmatprep.mubr.bf16.mxu0 0
        %1465 = vmatmul.mubr.bf16.gmra.mrb[0].mxu0 %v1427
        %v1466 = vpop.f32.mrb[0].mxu0
        %v1467 = vadd.f32 0.0, %v1466
        %v1468 = vpop.f32.mrb[0].mxu0
        %v1469 = vpop.f32.mrb[0].mxu0
        %v1470 = vpop.f32.mrb[0].mxu0
        %1471 = vdwg.mxu0
        %v1472 = vadd.f32 %v1312, %v1467
        %v1473 = vld [vmem:[%s709] sm:$0x1]
        %v1474 = vld [vmem:[%s712] sm:$0x1]
        %v1475 = vsel %vm769, %v1472, 0.0
        %1476 = vadd.xlane.f32.xlu0 %v1475
        %v1477 = vpop.xlane.xlu0 %1476
        %v1478 = vrcp.pop 32.0
        %v1479 = vmul.f32 %v1477, %v1478
        %v1480 = vsub.f32 %v1472, %v1479
        %v1481 = vmul.f32 %v1480, %v1480
        %v1482 = vsel %vm769, %v1481, 0.0
        %1483 = vadd.xlane.f32.xlu0 %v1482
        %v1484 = vpop.xlane.xlu0 %1483
        %v1485 = vmul.f32 %v1484, %v1478
        %v1486 = vadd.f32 %v1485, 1e-05
        %v1487 = vrsqrt.pop %v1486
        %v1488 = vmul.f32 %v1480, %v1487
        %v1490 = vlaneseq
        %v1491 = vshrl.u32 %v1490, 7
        %v1492 = vsub.s32 0, %v1491
        %v1493 = vrot.slane %v1473, %v1492
        %v1495 = vmul.f32 %v1488, %v1493
        %v1497 = vlaneseq
        %v1498 = vshrl.u32 %v1497, 7
        %v1499 = vsub.s32 0, %v1498
        %v1500 = vrot.slane %v1474, %v1499
        %v1502 = vadd.f32 %v1495, %v1500
        %v1503 = vpack.c.bf16 %v1502, %v1502
        %v1504 = vld [vmem:[%s717] sm:$0xf]
        %v1505 = vld [vmem:[%s717 + $0x4] sm:$0xf]
        %v1506 = vld [vmem:[%s717 + $0x8] sm:$0xf]
        %v1507 = vld [vmem:[%s717 + $0xc] sm:$0xf]
        %v1508 = vld [vmem:[%s720] sm:$0x1]
        %v1510 = vlaneseq
        %v1511 = vshrl.u32 %v1510, 7
        %v1512 = vsub.s32 0, %v1511
        %v1513 = vrot.slane %v1508, %v1512
        %v1519 = vunpack.c.l.b16 %v1504
        %v1520 = vunpack.c.l.b16 %v1505
        %v1521 = vunpack.c.l.b16 %v1506
        %v1522 = vunpack.c.l.b16 %v1507
        %v1523 = vpack.c.b16 %v1520, %v1519
        %v1524 = vpack.c.b16 %v1522, %v1521
        %v1528 = vsel %vm769, %v1503, 0
        %1530 = vmatprep.subr.bf16.mxu0 0
        %1531 = vmatpush1.bf16.msra.mxu0 %v1523
        %1532 = vmatprep.subr.bf16.mxu0 0
        %1533 = vmatpush1.bf16.msra.mxu0 %v1524
        %1534 = vmatprep.subr.bf16.mxu0 0
        %1535 = vmatpush1.bf16.msra.mxu0 0
        %1536 = vmatprep.subr.bf16.mxu0 0
        %1537 = vmatpush1.bf16.msra.mxu0 0
        %1538 = vmatprep.subr.bf16.mxu0 0
        %1539 = vmatpush1.bf16.msra.mxu0 0
        %1540 = vmatprep.subr.bf16.mxu0 0
        %1541 = vmatpush1.bf16.msra.mxu0 0
        %1542 = vmatprep.subr.bf16.mxu0 0
        %1543 = vmatpush1.bf16.msra.mxu0 0
        %1544 = vmatprep.subr.bf16.mxu0 0
        %1545 = vmatpush1.bf16.msra.mxu0 0
        %1546 = vmatprep.subr.bf16.mxu0 0
        %1547 = vmatpush1.bf16.msra.mxu0 0
        %1548 = vmatprep.subr.bf16.mxu0 0
        %1549 = vmatpush1.bf16.msra.mxu0 0
        %1550 = vmatprep.subr.bf16.mxu0 0
        %1551 = vmatpush1.bf16.msra.mxu0 0
        %1552 = vmatprep.subr.bf16.mxu0 0
        %1553 = vmatpush1.bf16.msra.mxu0 0
        %1554 = vmatprep.subr.bf16.mxu0 0
        %1555 = vmatpush1.bf16.msra.mxu0 0
        %1556 = vmatprep.subr.bf16.mxu0 0
        %1557 = vmatpush1.bf16.msra.mxu0 0
        %1558 = vmatprep.subr.bf16.mxu0 0
        %1559 = vmatpush1.bf16.msra.mxu0 0
        %1560 = vmatprep.subr.bf16.mxu0 0
        %1561 = vmatpush1.bf16.msra.mxu0 0
        %1562 = vmatprep.mubr.bf16.mxu0 0
        %1563 = vmatmul.mubr.bf16.gmra.mrb[0].mxu0 %v1528
        %v1564 = vpop.f32.mrb[0].mxu0
        %v1565 = vadd.f32 %v1513, %v1564
        %v1566 = vpop.f32.mrb[0].mxu0
        %v1567 = vpop.f32.mrb[0].mxu0
        %v1568 = vpop.f32.mrb[0].mxu0
        %1569 = vdwg.mxu0
        %v1570 = vmax.f32 %v1565, 0.0
        %v1571 = vpack.c.bf16 %v1570, %v1570
        %v1572 = vld [vmem:[%s725] sm:$0xf]
        %v1573 = vld [vmem:[%s725 + $0x4] sm:$0xf]
        %v1574 = vld [vmem:[%s725 + $0x8] sm:$0xf]
        %v1575 = vld [vmem:[%s725 + $0xc] sm:$0xf]
        %v1576 = vld [vmem:[%s725 + $0x10] sm:$0xf]
        %v1577 = vld [vmem:[%s725 + $0x14] sm:$0xf]
        %v1578 = vld [vmem:[%s725 + $0x18] sm:$0xf]
        %v1579 = vld [vmem:[%s725 + $0x1c] sm:$0xf]
        %v1580 = vld [vmem:[%s728] sm:$0x1]
        %v1582 = vlaneseq
        %v1583 = vshrl.u32 %v1582, 7
        %v1584 = vsub.s32 0, %v1583
        %v1585 = vrot.slane %v1580, %v1584
        %v1595 = vunpack.c.l.b16 %v1572
        %v1596 = vunpack.c.l.b16 %v1573
        %v1597 = vunpack.c.l.b16 %v1574
        %v1598 = vunpack.c.l.b16 %v1575
        %v1599 = vunpack.c.l.b16 %v1576
        %v1600 = vunpack.c.l.b16 %v1577
        %v1601 = vunpack.c.l.b16 %v1578
        %v1602 = vunpack.c.l.b16 %v1579
        %v1603 = vpack.c.b16 %v1596, %v1595
        %v1604 = vpack.c.b16 %v1598, %v1597
        %v1605 = vpack.c.b16 %v1600, %v1599
        %v1606 = vpack.c.b16 %v1602, %v1601
        %vm1611 = vcmask 523264
        %v1613 = vsel %vm1611, %v1571, 0
        %1615 = vmatprep.subr.bf16.mxu0 0
        %1616 = vmatpush1.bf16.msra.mxu0 %v1603
        %1617 = vmatprep.subr.bf16.mxu0 0
        %1618 = vmatpush1.bf16.msra.mxu0 %v1604
        %1619 = vmatprep.subr.bf16.mxu0 0
        %1620 = vmatpush1.bf16.msra.mxu0 %v1605
        %1621 = vmatprep.subr.bf16.mxu0 0
        %1622 = vmatpush1.bf16.msra.mxu0 %v1606
        %1623 = vmatprep.subr.bf16.mxu0 0
        %1624 = vmatpush1.bf16.msra.mxu0 0
        %1625 = vmatprep.subr.bf16.mxu0 0
        %1626 = vmatpush1.bf16.msra.mxu0 0
        %1627 = vmatprep.subr.bf16.mxu0 0
        %1628 = vmatpush1.bf16.msra.mxu0 0
        %1629 = vmatprep.subr.bf16.mxu0 0
        %1630 = vmatpush1.bf16.msra.mxu0 0
        %1631 = vmatprep.subr.bf16.mxu0 0
        %1632 = vmatpush1.bf16.msra.mxu0 0
        %1633 = vmatprep.subr.bf16.mxu0 0
        %1634 = vmatpush1.bf16.msra.mxu0 0
        %1635 = vmatprep.subr.bf16.mxu0 0
        %1636 = vmatpush1.bf16.msra.mxu0 0
        %1637 = vmatprep.subr.bf16.mxu0 0
        %1638 = vmatpush1.bf16.msra.mxu0 0
        %1639 = vmatprep.subr.bf16.mxu0 0
        %1640 = vmatpush1.bf16.msra.mxu0 0
        %1641 = vmatprep.subr.bf16.mxu0 0
        %1642 = vmatpush1.bf16.msra.mxu0 0
        %1643 = vmatprep.subr.bf16.mxu0 0
        %1644 = vmatpush1.bf16.msra.mxu0 0
        %1645 = vmatprep.subr.bf16.mxu0 0
        %1646 = vmatpush1.bf16.msra.mxu0 0
        %1647 = vmatprep.mubr.bf16.mxu0 0
        %1648 = vmatmul.mubr.bf16.gmra.mrb[0].mxu0 %v1613
        %v1649 = vpop.f32.mrb[0].mxu0
        %v1650 = vadd.f32 %v1585, %v1649
        %v1651 = vpop.f32.mrb[0].mxu0
        %v1652 = vpop.f32.mrb[0].mxu0
        %v1653 = vpop.f32.mrb[0].mxu0
        %1654 = vdwg.mxu0
        %v1655 = vadd.f32 %v1650, %v1502
        %v1656 = vld [vmem:[%s731] sm:$0x1]
        %v1657 = vld [vmem:[%s734] sm:$0x1]
        %v1658 = vsel %vm769, %v1655, 0.0
        %1659 = vadd.xlane.f32.xlu0 %v1658
        %v1660 = vpop.xlane.xlu0 %1659
        %v1661 = vmul.f32 %v1660, %v1478
        %v1662 = vsub.f32 %v1655, %v1661
        %v1663 = vmul.f32 %v1662, %v1662
        %v1664 = vsel %vm769, %v1663, 0.0
        %1665 = vadd.xlane.f32.xlu0 %v1664
        %v1666 = vpop.xlane.xlu0 %1665
        %v1667 = vmul.f32 %v1666, %v1478
        %v1668 = vadd.f32 %v1667, 1e-05
        %v1669 = vrsqrt.pop %v1668
        %v1670 = vmul.f32 %v1662, %v1669
        %v1672 = vlaneseq
        %v1673 = vshrl.u32 %v1672, 7
        %v1674 = vsub.s32 0, %v1673
        %v1675 = vrot.slane %v1656, %v1674
        %v1677 = vmul.f32 %v1670, %v1675
        %v1679 = vlaneseq
        %v1680 = vshrl.u32 %v1679, 7
        %v1681 = vsub.s32 0, %v1680
        %v1682 = vrot.slane %v1657, %v1681
        %v1684 = vadd.f32 %v1677, %v1682
        %1685 = vst.msk [vmem:[#allocation2] sm:$0xff] %vm769, %v1684
        %p1686 = scmp.eq.s32.totalorder %s35, 1
        // Predicated region
        $region89: #{encoder_forward.1} parent=83 // pred_check
          %p1687 = pneg %p1686
        $region90: #{encoder_forward.1} parent=83 // pred_check_branch
          %1689 = sbr.rel (%p1687) target = $region92
        $region91: #{encoder_forward.1} parent=83 // pred_region
          %v1690 = vld [vmem:[%s14] sm:$0x1]
          %v1691 = vld [vmem:[%s15] sm:$0x1]
          %v1692 = vsel %vm769, %v1684, 0.0
          %1693 = vadd.xlane.f32.xlu0 %v1692
          %v1694 = vpop.xlane.xlu0 %1693
          %v1695 = vmul.f32 %v1694, %v1478
          %v1696 = vsub.f32 %v1684, %v1695
          %v1697 = vmul.f32 %v1696, %v1696
          %v1698 = vsel %vm769, %v1697, 0.0
          %1699 = vadd.xlane.f32.xlu0 %v1698
          %v1700 = vpop.xlane.xlu0 %1699
          %v1701 = vmul.f32 %v1700, %v1478
          %v1702 = vadd.f32 %v1701, 1e-05
          %v1703 = vrsqrt.pop %v1702
          %v1704 = vmul.f32 %v1696, %v1703
          %v1706 = vlaneseq
          %v1707 = vshrl.u32 %v1706, 7
          %v1708 = vsub.s32 0, %v1707
          %v1709 = vrot.slane %v1690, %v1708
          %v1711 = vmul.f32 %v1704, %v1709
          %v1713 = vlaneseq
          %v1714 = vshrl.u32 %v1713, 7
          %v1715 = vsub.s32 0, %v1714
          %v1716 = vrot.slane %v1691, %v1715
          %v1718 = vadd.f32 %v1711, %v1716
          %1719 = vst.msk [vmem:[%s683] sm:$0xff] %vm769, %v1718
        $region92: #{encoder_forward.1} parent=83 // pred_fallthru
          _
        %s1720 = sand.u32 %s456, 1
        %s1721 = scalar_lea.sflag [#allocation4], %s1720
        %s1722 = sand.u32 %s456, 1
        %s1723 = smul.addr %s1722, 8
        %s1724 = scalar_lea.vmem [#allocation3], %s1723
        // Predicated region
        $region93: #{encoder_forward.1} parent=83 // pred_check
          %p1725 = pneg %p466
        $region94: #{encoder_forward.1} parent=83 // pred_check_branch
          %1727 = sbr.rel (%p1725) target = $region96
        $region95: #{encoder_forward.1} parent=83 // pred_region
          %s1729 = ssub.s32 128, 128
          %1730 = vsyncadd %s1721, %s1729
          %s1731 = smul.addr %s34, 128
          %s1732 = scalar_lea.hbm %s16, %s1731
          %s1734 = sshll.u32 %s1724, 4
          %s1735 = int_to_ptr.vmem [resolvable:$true] %s1734
          %1737 = dma.vmem_to_hbm [thread:$0]  %s1735, 128, %s1732, %s1721
        $region96: #{encoder_forward.1} parent=83 // pred_fallthru
          _
      $region84: #{encoder_forward.1} parent=5 // pred_fallthru
        _
      %p1738 = scmp.le.s32.totalorder 2, %s25
      // Predicated region
      $region97: #{encoder_forward.1} parent=5 // pred_check
        %p1739 = pneg %p1738
      $region98: #{encoder_forward.1} parent=5 // pred_check_branch
        %1741 = sbr.rel (%p1739) target = $region100
      $region99: #{encoder_forward.1} parent=5 // pred_region
        %s1742 = ssub.s32 %s25, 2
        // Predicated region
        $region101: #{encoder_forward.1} parent=99 // pred_check
          %p1743 = pneg %p472
        $region102: #{encoder_forward.1} parent=99 // pred_check_branch
          %1745 = sbr.rel (%p1743) target = $region104
        $region103: #{encoder_forward.1} parent=99 // pred_region
          %s1746 = sand.u32 %s457, 1
          %s1747 = scalar_lea.sflag [#allocation4], %s1746
          %s1748 = sand.u32 %s457, 1
          %s1749 = smul.addr %s1748, 8
          %s1750 = scalar_lea.vmem [#allocation3], %s1749
          %1751 = dma.done %s1747, 128
        $region104: #{encoder_forward.1} parent=99 // pred_fallthru
          _
      $region100: #{encoder_forward.1} parent=5 // pred_fallthru
        _
    $region6: #{encoder_forward.1} parent=1 // loop_footer
      %s29 = sadd.s32 1, %s25
    $region7: #{encoder_forward.1} parent=1 // loop_footer_branch
      %24 = sbr.rel target = $region3
    $region8: #{encoder_forward.1} parent=1 // loop_exit
      _
    %1752 = vsyncpa [#allocation4], 1
    %s1753 = scalar_lea.sflag [#allocation4], 1
    %1754 = vsyncpa %s1753, 1

</llo_original>
